<compile_context>
chip_gen: v7x
topology: tpu7x:2x2x1
jax: 0.10.0
libtpu: 0.0.40
codegen_flags: <defaults>
</compile_context>

<pallas_src>
import functools

import jax
import jax.numpy as jnp
from jax.experimental import pallas as pl
from jax.experimental.pallas import tpu as pltpu


def _round_up(a, m):
    return ((a + m - 1) // m) * m


def _tensorcores_per_chip():
    # v7x has 2 TensorCores per chip; v5e/v6e have 1.  The "parallel" grid
    # axis is how work is sharded across cores, so on v7x keep >= 2 steps.
    try:
        kind = jax.devices()[0].device_kind.lower()
    except Exception:
        return 1
    return 2 if ("v7" in kind or "7x" in kind) else 1


def coxnn_kernel(x_ref, w1_ref, b1_ref, w2_ref, b2_ref,
                 w3_ref, b3_ref, w4_ref, b4_ref, o_ref, *, precision):
    cd = x_ref.dtype  # MXU operand dtype (f32 or bf16); accum/bias/ReLU in f32
    # fc1 -> ReLU (dropout is identity at inference)
    h = jnp.dot(x_ref[...], w1_ref[...],
                preferred_element_type=jnp.float32, precision=precision)
    h = jnp.maximum(h + b1_ref[...], 0.0)
    # fc2 -> ReLU
    h = jnp.dot(h.astype(cd), w2_ref[...],
                preferred_element_type=jnp.float32, precision=precision)
    h = jnp.maximum(h + b2_ref[...], 0.0)
    # fc3 -> ReLU
    h = jnp.dot(h.astype(cd), w3_ref[...],
                preferred_element_type=jnp.float32, precision=precision)
    h = jnp.maximum(h + b3_ref[...], 0.0)
    # fc4 (linear head, output dim zero-padded to 8 lanes in the wrapper)
    o = jnp.dot(h.astype(cd), w4_ref[...],
                preferred_element_type=jnp.float32, precision=precision)
    o_ref[...] = (o + b4_ref[...]).astype(o_ref.dtype)


def prepare_coxnn_params(params, *, use_bf16=False):
    """One-time weight preprocessing (hoisted out of the per-call path):
    transpose torch (out, in) weights to (in, out), reshape biases to (1, H),
    zero-pad the 1-wide Cox head to 8 output lanes, optionally cast the
    streamed operands (weights) to bf16.  Biases stay f32."""
    (w1, b1), (w2, b2), (w3, b3), (w4, b4) = params
    D_out = w4.shape[0]
    D_out_p = max(D_out, 8)   # do NOT pad to 128: keeps writeback bytes tiny
    wdt = jnp.bfloat16 if use_bf16 else jnp.float32

    w4_p = jnp.zeros((w4.shape[1], D_out_p), jnp.float32).at[:, :D_out].set(w4.T)
    b4_p = jnp.zeros((1, D_out_p), jnp.float32).at[:, :D_out].set(
        b4.reshape(1, D_out))

    return dict(
        w1=w1.T.astype(wdt), b1=b1.reshape(1, -1).astype(jnp.float32),
        w2=w2.T.astype(wdt), b2=b2.reshape(1, -1).astype(jnp.float32),
        w3=w3.T.astype(wdt), b3=b3.reshape(1, -1).astype(jnp.float32),
        w4=w4_p.astype(wdt), b4=b4_p,
        d_out=D_out, stream_dtype=wdt,
    )


def coxnn_forward(x, prepared, *, block_b_max=2048):
    """x: (B, D_in); prepared: output of prepare_coxnn_params.
    Returns (B * D_out, 1) f32, matching CoxNN.forward (eval mode,
    batchnorm=False)."""
    w1, b1 = prepared["w1"], prepared["b1"]
    w2, b2 = prepared["w2"], prepared["b2"]
    w3, b3 = prepared["w3"], prepared["b3"]
    w4, b4 = prepared["w4"], prepared["b4"]
    D_out = prepared["d_out"]
    stream_dtype = prepared["stream_dtype"]

    B, D_in = x.shape
    H1, H2, H3 = w1.shape[1], w2.shape[1], w3.shape[1]
    D_out_p = w4.shape[1]

    # For the full bandwidth win in bf16 mode the caller should already hold x
    # in bf16; cast here only if dtypes disagree.
    if x.dtype != jnp.dtype(stream_dtype):
        x = x.astype(stream_dtype)

    # Batch tiling: large 8-aligned tiles amortize the ~0.35us/step overhead.
    block_b = min(block_b_max, _round_up(B, 8))
    # On v7x keep at least one grid step per TensorCore so both get work.
    n_tc = _tensorcores_per_chip()
    if n_tc > 1 and B > 8:
        block_b = min(block_b, _round_up((B + n_tc - 1) // n_tc, 8))
    block_b = max(block_b, 8)

    # Ragged last block handled by Pallas: reads padded, stores masked.
    grid = (pl.cdiv(B, block_b),)
    rep = lambda i: (0, 0)  # weights / biases resident across all grid steps

    # f32 path uses exact MXU passes for parity with the f32 model; bf16 path
    # is single-pass MXU with f32 accumulation.
    precision = (jax.lax.Precision.DEFAULT if stream_dtype == jnp.bfloat16
                 else jax.lax.Precision.HIGHEST)

    # Scoped-VMEM estimate: only raise the limit for very large tiles.
    xb = jnp.dtype(stream_dtype).itemsize
    est_vmem = (block_b * (2 * D_in * xb + 4 * (H1 + H2 + H3) + 2 * 4 * D_out_p)
                + (D_in * H1 + H1 * H2 + H2 * H3 + H3 * D_out_p) * xb
                + 4 * (H1 + H2 + H3 + D_out_p))
    cp_kwargs = dict(dimension_semantics=("parallel",))
    if est_vmem > 10 * (1 << 20):
        cp_kwargs["vmem_limit_bytes"] = int(est_vmem * 1.5)

    out_p = pl.pallas_call(
        functools.partial(coxnn_kernel, precision=precision),
        out_shape=jax.ShapeDtypeStruct((B, D_out_p), jnp.float32),
        grid=grid,
        in_specs=[
            pl.BlockSpec((block_b, D_in), lambda i: (i, 0)),  # x tile
            pl.BlockSpec((D_in, H1), rep), pl.BlockSpec((1, H1), rep),
            pl.BlockSpec((H1, H2), rep), pl.BlockSpec((1, H2), rep),
            pl.BlockSpec((H2, H3), rep), pl.BlockSpec((1, H3), rep),
            pl.BlockSpec((H3, D_out_p), rep), pl.BlockSpec((1, D_out_p), rep),
        ],
        out_specs=pl.BlockSpec((block_b, D_out_p), lambda i: (i, 0)),
        compiler_params=pltpu.CompilerParams(**cp_kwargs),
    )(x, w1, b1, w2, b2, w3, b3, w4, b4)

    # CoxNN.forward: pred = risk_model(src).view(-1, 1)
    return out_p[:, :D_out].reshape(-1, 1)


if __name__ == "__main__":
    # Small shapes consistent with the module: D_in features, 3 hidden layers,
    # single Cox risk output.
    B, D_in = 16, 32
    HS = (64, 32, 16)
    D_out = 1

    key = jax.random.PRNGKey(0)
    ks = jax.random.split(key, 10)

    def linear_init(kw, kb, fan_in, fan_out):
        # nn.Linear default init, torch (out, in) layout.
        bound = 1.0 / (fan_in ** 0.5)
        w = jax.random.uniform(kw, (fan_out, fan_in), jnp.float32, -bound, bound)
        b = jax.random.uniform(kb, (fan_out,), jnp.float32, -bound, bound)
        return w, b

    x = jax.random.normal(ks[0], (B, D_in), dtype=jnp.float32)
    w1, b1 = linear_init(ks[1], ks[2], D_in, HS[0])
    w2, b2 = linear_init(ks[3], ks[4], HS[0], HS[1])
    w3, b3 = linear_init(ks[5], ks[6], HS[1], HS[2])
    w4, b4 = linear_init(ks[7], ks[8], HS[2], D_out)
    params = ((w1, b1), (w2, b2), (w3, b3), (w4, b4))

    # Pure-JAX reference: eval-mode, batchnorm=False forward + view(-1, 1).
    hp = jax.lax.Precision.HIGHEST

    def ref_forward(xv):
        h = jnp.maximum(jnp.dot(xv, w1.T, precision=hp) + b1, 0.0)
        h = jnp.maximum(jnp.dot(h, w2.T, precision=hp) + b2, 0.0)
        h = jnp.maximum(jnp.dot(h, w3.T, precision=hp) + b3, 0.0)
        return (jnp.dot(h, w4.T, precision=hp) + b4).reshape(-1, 1)

    # f32 path (exact).
    prep_f32 = prepare_coxnn_params(params)
    out = jax.block_until_ready(coxnn_forward(x, prep_f32))
    ref = ref_forward(x)
    assert out.shape == (B * D_out, 1)
    assert jnp.allclose(out, ref, atol=1e-5, rtol=1e-5), "f32 mismatch vs reference"

    # Ragged-batch path (exercises cdiv grid + masked last-block stores).
    B2 = 1000
    x2 = jax.random.normal(ks[9], (B2, D_in), dtype=jnp.float32)
    out2 = jax.block_until_ready(coxnn_forward(x2, prep_f32, block_b_max=256))
    ref2 = ref_forward(x2)
    assert out2.shape == (B2 * D_out, 1)
    assert jnp.allclose(out2, ref2, atol=1e-5, rtol=1e-5), "ragged-batch mismatch"

    # Optional bf16 streaming path (halves x HBM read traffic).
    prep_bf16 = prepare_coxnn_params(params, use_bf16=True)
    out_bf16 = jax.block_until_ready(
        coxnn_forward(x.astype(jnp.bfloat16), prep_bf16))
    assert out_bf16.shape == (B * D_out, 1)
    assert jnp.allclose(out_bf16, ref, atol=5e-2, rtol=5e-2), "bf16 mismatch"

    print("KERNEL_OK")
</pallas_src>

<mosaic_0001>
module attributes {stable_mosaic.version = 11 : i64} {
  func.func @coxnn_kernel(%arg0: i32, %arg1: memref<16x32xf32, #tpu.memory_space<vmem>>, %arg2: memref<32x64xf32, #tpu.memory_space<vmem>>, %arg3: memref<1x64xf32, #tpu.memory_space<vmem>>, %arg4: memref<64x32xf32, #tpu.memory_space<vmem>>, %arg5: memref<1x32xf32, #tpu.memory_space<vmem>>, %arg6: memref<32x16xf32, #tpu.memory_space<vmem>>, %arg7: memref<1x16xf32, #tpu.memory_space<vmem>>, %arg8: memref<16x8xf32, #tpu.memory_space<vmem>>, %arg9: memref<1x8xf32, #tpu.memory_space<vmem>>, %arg10: memref<16x8xf32, #tpu.memory_space<vmem>>) attributes {dimension_semantics = [#tpu.dimension_semantics<parallel>], iteration_bounds = array<i64: 1>, scalar_prefetch = 0 : i64, scratch_operands = 0 : i64, tpu.core_type = #tpu.core_type<tc>, window_params = [{transform_indices = @transform_0, window_bounds = array<i64: 16, 32>}, {pipeline_mode = #tpu.pipeline_mode<synchronous>, transform_indices = @transform_1, window_bounds = array<i64: 32, 64>}, {pipeline_mode = #tpu.pipeline_mode<synchronous>, transform_indices = @transform_2, window_bounds = array<i64: 1, 64>}, {pipeline_mode = #tpu.pipeline_mode<synchronous>, transform_indices = @transform_3, window_bounds = array<i64: 64, 32>}, {pipeline_mode = #tpu.pipeline_mode<synchronous>, transform_indices = @transform_4, window_bounds = array<i64: 1, 32>}, {pipeline_mode = #tpu.pipeline_mode<synchronous>, transform_indices = @transform_5, window_bounds = array<i64: 32, 16>}, {pipeline_mode = #tpu.pipeline_mode<synchronous>, transform_indices = @transform_6, window_bounds = array<i64: 1, 16>}, {pipeline_mode = #tpu.pipeline_mode<synchronous>, transform_indices = @transform_7, window_bounds = array<i64: 16, 8>}, {pipeline_mode = #tpu.pipeline_mode<synchronous>, transform_indices = @transform_8, window_bounds = array<i64: 1, 8>}, {transform_indices = @transform_9, window_bounds = array<i64: 16, 8>}]} {
    %c0 = arith.constant 0 : index
    %c0_0 = arith.constant 0 : index
    %0 = vector.load %arg1[%c0, %c0_0] : memref<16x32xf32, #tpu.memory_space<vmem>>, vector<16x32xf32>
    %c0_1 = arith.constant 0 : index
    %c0_2 = arith.constant 0 : index
    %1 = vector.load %arg2[%c0_1, %c0_2] : memref<32x64xf32, #tpu.memory_space<vmem>>, vector<32x64xf32>
    %cst = arith.constant dense<0.000000e+00> : vector<16x64xf32>
    %2 = tpu.matmul %0, %1, %cst {dimension_numbers = #tpu.dot_dimension_numbers<[1], [0], [0], [1], [0, 0, 1, 1], [], []>, precision = #tpu.contract_precision<fp32>} : vector<16x32xf32>, vector<32x64xf32>, vector<16x64xf32> -> vector<16x64xf32>
    %c0_3 = arith.constant 0 : index
    %c0_4 = arith.constant 0 : index
    %3 = vector.load %arg3[%c0_3, %c0_4] : memref<1x64xf32, #tpu.memory_space<vmem>>, vector<1x64xf32>
    %4 = vector.broadcast %3 : vector<1x64xf32> to vector<16x64xf32>
    %5 = arith.addf %2, %4 : vector<16x64xf32>
    %cst_5 = arith.constant 0.000000e+00 : f32
    %6 = vector.broadcast %cst_5 : f32 to vector<16x64xf32>
    %7 = arith.maximumf %5, %6 : vector<16x64xf32>
    %c0_6 = arith.constant 0 : index
    %c0_7 = arith.constant 0 : index
    %8 = vector.load %arg4[%c0_6, %c0_7] : memref<64x32xf32, #tpu.memory_space<vmem>>, vector<64x32xf32>
    %cst_8 = arith.constant dense<0.000000e+00> : vector<16x32xf32>
    %9 = tpu.matmul %7, %8, %cst_8 {dimension_numbers = #tpu.dot_dimension_numbers<[1], [0], [0], [1], [0, 0, 1, 1], [], []>, precision = #tpu.contract_precision<fp32>} : vector<16x64xf32>, vector<64x32xf32>, vector<16x32xf32> -> vector<16x32xf32>
    %c0_9 = arith.constant 0 : index
    %c0_10 = arith.constant 0 : index
    %10 = vector.load %arg5[%c0_9, %c0_10] : memref<1x32xf32, #tpu.memory_space<vmem>>, vector<1x32xf32>
    %11 = vector.broadcast %10 : vector<1x32xf32> to vector<16x32xf32>
    %12 = arith.addf %9, %11 : vector<16x32xf32>
    %cst_11 = arith.constant 0.000000e+00 : f32
    %13 = vector.broadcast %cst_11 : f32 to vector<16x32xf32>
    %14 = arith.maximumf %12, %13 : vector<16x32xf32>
    %c0_12 = arith.constant 0 : index
    %c0_13 = arith.constant 0 : index
    %15 = vector.load %arg6[%c0_12, %c0_13] : memref<32x16xf32, #tpu.memory_space<vmem>>, vector<32x16xf32>
    %cst_14 = arith.constant dense<0.000000e+00> : vector<16x16xf32>
    %16 = tpu.matmul %14, %15, %cst_14 {dimension_numbers = #tpu.dot_dimension_numbers<[1], [0], [0], [1], [0, 0, 1, 1], [], []>, precision = #tpu.contract_precision<fp32>} : vector<16x32xf32>, vector<32x16xf32>, vector<16x16xf32> -> vector<16x16xf32>
    %c0_15 = arith.constant 0 : index
    %c0_16 = arith.constant 0 : index
    %17 = vector.load %arg7[%c0_15, %c0_16] : memref<1x16xf32, #tpu.memory_space<vmem>>, vector<1x16xf32>
    %18 = vector.broadcast %17 : vector<1x16xf32> to vector<16x16xf32>
    %19 = arith.addf %16, %18 : vector<16x16xf32>
    %cst_17 = arith.constant 0.000000e+00 : f32
    %20 = vector.broadcast %cst_17 : f32 to vector<16x16xf32>
    %21 = arith.maximumf %19, %20 : vector<16x16xf32>
    %c0_18 = arith.constant 0 : index
    %c0_19 = arith.constant 0 : index
    %22 = vector.load %arg8[%c0_18, %c0_19] : memref<16x8xf32, #tpu.memory_space<vmem>>, vector<16x8xf32>
    %cst_20 = arith.constant dense<0.000000e+00> : vector<16x8xf32>
    %23 = tpu.matmul %21, %22, %cst_20 {dimension_numbers = #tpu.dot_dimension_numbers<[1], [0], [0], [1], [0, 0, 1, 1], [], []>, precision = #tpu.contract_precision<fp32>} : vector<16x16xf32>, vector<16x8xf32>, vector<16x8xf32> -> vector<16x8xf32>
    %c0_21 = arith.constant 0 : index
    %c0_22 = arith.constant 0 : index
    %24 = vector.load %arg9[%c0_21, %c0_22] : memref<1x8xf32, #tpu.memory_space<vmem>>, vector<1x8xf32>
    %25 = vector.broadcast %24 : vector<1x8xf32> to vector<16x8xf32>
    %26 = arith.addf %23, %25 : vector<16x8xf32>
    %c0_23 = arith.constant 0 : index
    %c0_24 = arith.constant 0 : index
    %27 = vector.load %arg10[%c0_23, %c0_24] : memref<16x8xf32, #tpu.memory_space<vmem>>, vector<16x8xf32>
    tpu.vector_store %arg10[%c0_23, %c0_24], %26 {strides = array<i32>} : memref<16x8xf32, #tpu.memory_space<vmem>>, vector<16x8xf32>,
    return
  }
  func.func @transform_0(%arg0: i32) -> (i32, i32) {
    %c0_i32 = arith.constant 0 : i32
    %c0_i32_0 = arith.constant 0 : i32
    return %arg0, %c0_i32 : i32, i32
  }
  func.func @transform_1(%arg0: i32) -> (i32, i32) {
    %c0_i32 = arith.constant 0 : i32
    %c0_i32_0 = arith.constant 0 : i32
    %c0_i32_1 = arith.constant 0 : i32
    return %c0_i32, %c0_i32_0 : i32, i32
  }
  func.func @transform_2(%arg0: i32) -> (i32, i32) {
    %c0_i32 = arith.constant 0 : i32
    %c0_i32_0 = arith.constant 0 : i32
    %c0_i32_1 = arith.constant 0 : i32
    return %c0_i32, %c0_i32_0 : i32, i32
  }
  func.func @transform_3(%arg0: i32) -> (i32, i32) {
    %c0_i32 = arith.constant 0 : i32
    %c0_i32_0 = arith.constant 0 : i32
    %c0_i32_1 = arith.constant 0 : i32
    return %c0_i32, %c0_i32_0 : i32, i32
  }
  func.func @transform_4(%arg0: i32) -> (i32, i32) {
    %c0_i32 = arith.constant 0 : i32
    %c0_i32_0 = arith.constant 0 : i32
    %c0_i32_1 = arith.constant 0 : i32
    return %c0_i32, %c0_i32_0 : i32, i32
  }
  func.func @transform_5(%arg0: i32) -> (i32, i32) {
    %c0_i32 = arith.constant 0 : i32
    %c0_i32_0 = arith.constant 0 : i32
    %c0_i32_1 = arith.constant 0 : i32
    return %c0_i32, %c0_i32_0 : i32, i32
  }
  func.func @transform_6(%arg0: i32) -> (i32, i32) {
    %c0_i32 = arith.constant 0 : i32
    %c0_i32_0 = arith.constant 0 : i32
    %c0_i32_1 = arith.constant 0 : i32
    return %c0_i32, %c0_i32_0 : i32, i32
  }
  func.func @transform_7(%arg0: i32) -> (i32, i32) {
    %c0_i32 = arith.constant 0 : i32
    %c0_i32_0 = arith.constant 0 : i32
    %c0_i32_1 = arith.constant 0 : i32
    return %c0_i32, %c0_i32_0 : i32, i32
  }
  func.func @transform_8(%arg0: i32) -> (i32, i32) {
    %c0_i32 = arith.constant 0 : i32
    %c0_i32_0 = arith.constant 0 : i32
    %c0_i32_1 = arith.constant 0 : i32
    return %c0_i32, %c0_i32_0 : i32, i32
  }
  func.func @transform_9(%arg0: i32) -> (i32, i32) {
    %c0_i32 = arith.constant 0 : i32
    %c0_i32_0 = arith.constant 0 : i32
    return %arg0, %c0_i32 : i32, i32
  }
}

</mosaic_0001>

<llo_original>
// kernel: tpu_custom_call.1
$region0: #{tpu_custom_call.1}
  #allocation0 [shape = 'u32[]', space=smem, size = 0x4, offset = 0x4, fixed_abs, tag = 'smem constant byte address 0x4 - core index']
  #allocation1 [shape = 'u32[144,128]{1,0:T(1,128)}', space=vmem, size = 0x12000, scoped, tag = 'internal scratch']
  %s0 = inlined_call_operand.vmem [shape: f32[16,32], index: 0, kind: input, shape index: {}]
  %s1 = inlined_call_operand.vmem [shape: f32[32,64], index: 1, kind: input, shape index: {}]
  %s2 = inlined_call_operand.vmem [shape: f32[1,64], index: 2, kind: input, shape index: {}]
  %s3 = inlined_call_operand.vmem [shape: f32[64,32], index: 3, kind: input, shape index: {}]
  %s4 = inlined_call_operand.vmem [shape: f32[1,32], index: 4, kind: input, shape index: {}]
  %s5 = inlined_call_operand.vmem [shape: f32[32,16], index: 5, kind: input, shape index: {}]
  %s6 = inlined_call_operand.vmem [shape: f32[1,16], index: 6, kind: input, shape index: {}]
  %s7 = inlined_call_operand.vmem [shape: f32[16,8], index: 7, kind: input, shape index: {}]
  %s8 = inlined_call_operand.vmem [shape: f32[1,8], index: 8, kind: input, shape index: {}]
  %s9 = inlined_call_operand.vmem [shape: f32[16,8], index: 9, kind: output, shape index: {}]
  %s10 = sld [smem:[#allocation0]]
  $region46: #{tpu_custom_call.1} parent=0
    _
  %s12 = ssub.s32 1, %s10
  %s13 = scalar_select 0, %s12, %s10
  // Predicated region
  $region2: #{tpu_custom_call.1} parent=0 // pred_check
    _
  $region3: #{tpu_custom_call.1} parent=0 // pred_check_branch
    %15 = sbr.rel (0) target = $region5
  $region4: #{tpu_custom_call.1} parent=0 // pred_region
    _
  $region5: #{tpu_custom_call.1} parent=0 // pred_fallthru
    _
  // Predicated region
  $region6: #{tpu_custom_call.1} parent=0 // pred_check
    _
  $region7: #{tpu_custom_call.1} parent=0 // pred_check_branch
    %17 = sbr.rel (0) target = $region9
  $region8: #{tpu_custom_call.1} parent=0 // pred_region
    _
  $region9: #{tpu_custom_call.1} parent=0 // pred_fallthru
    _
  // Predicated region
  $region10: #{tpu_custom_call.1} parent=0 // pred_check
    _
  $region11: #{tpu_custom_call.1} parent=0 // pred_check_branch
    %19 = sbr.rel (0) target = $region13
  $region12: #{tpu_custom_call.1} parent=0 // pred_region
    _
  $region13: #{tpu_custom_call.1} parent=0 // pred_fallthru
    _
  // Predicated region
  $region14: #{tpu_custom_call.1} parent=0 // pred_check
    _
  $region15: #{tpu_custom_call.1} parent=0 // pred_check_branch
    %21 = sbr.rel (0) target = $region17
  $region16: #{tpu_custom_call.1} parent=0 // pred_region
    _
  $region17: #{tpu_custom_call.1} parent=0 // pred_fallthru
    _
  // Predicated region
  $region18: #{tpu_custom_call.1} parent=0 // pred_check
    _
  $region19: #{tpu_custom_call.1} parent=0 // pred_check_branch
    %23 = sbr.rel (0) target = $region21
  $region20: #{tpu_custom_call.1} parent=0 // pred_region
    _
  $region21: #{tpu_custom_call.1} parent=0 // pred_fallthru
    _
  // Predicated region
  $region22: #{tpu_custom_call.1} parent=0 // pred_check
    _
  $region23: #{tpu_custom_call.1} parent=0 // pred_check_branch
    %25 = sbr.rel (0) target = $region25
  $region24: #{tpu_custom_call.1} parent=0 // pred_region
    _
  $region25: #{tpu_custom_call.1} parent=0 // pred_fallthru
    _
  // Predicated region
  $region26: #{tpu_custom_call.1} parent=0 // pred_check
    _
  $region27: #{tpu_custom_call.1} parent=0 // pred_check_branch
    %27 = sbr.rel (0) target = $region29
  $region28: #{tpu_custom_call.1} parent=0 // pred_region
    _
  $region29: #{tpu_custom_call.1} parent=0 // pred_fallthru
    _
  // Predicated region
  $region30: #{tpu_custom_call.1} parent=0 // pred_check
    _
  $region31: #{tpu_custom_call.1} parent=0 // pred_check_branch
    %29 = sbr.rel (0) target = $region33
  $region32: #{tpu_custom_call.1} parent=0 // pred_region
    _
  $region33: #{tpu_custom_call.1} parent=0 // pred_fallthru
    _
  // Predicated region
  $region34: #{tpu_custom_call.1} parent=0 // pred_check
    _
  $region35: #{tpu_custom_call.1} parent=0 // pred_check_branch
    %31 = sbr.rel (0) target = $region37
  $region36: #{tpu_custom_call.1} parent=0 // pred_region
    _
  $region37: #{tpu_custom_call.1} parent=0 // pred_fallthru
    _
  %v32 = vld [vmem:[%s0] sm:$0xff]
  %v33 = vld [vmem:[%s0 + $0x8] sm:$0xff]
  %v34 = vld [vmem:[%s1] sm:$0xff]
  %v35 = vld [vmem:[%s1 + $0x8] sm:$0xff]
  %v36 = vld [vmem:[%s1 + $0x10] sm:$0xff]
  %v37 = vld [vmem:[%s1 + $0x18] sm:$0xff]
  %v38 = vld [vmem:[%s2] sm:$0x1]
  %v40 = vlaneseq
  %v41 = vshrl.u32 %v40, 7
  %v42 = vsub.s32 0, %v41
  %v43 = vrot.slane %v38, %v42
  %vm45 = vcmask 261120
  %v47 = vsel %vm45, %v32, 0
  %v50 = vsel %vm45, %v33, 0
  %52 = vmatprep.subr.mxu0 0.0
  %v53 = vand.u32 %v34, 4294901760
  %54 = vmatpush1.msra.mxu0 %v53
  %55 = vmatprep.subr.mxu0 0.0
  %v56 = vand.u32 %v35, 4294901760
  %57 = vmatpush1.msra.mxu0 %v56
  %58 = vmatprep.subr.mxu0 0.0
  %v59 = vand.u32 %v36, 4294901760
  %60 = vmatpush1.msra.mxu0 %v59
  %61 = vmatprep.subr.mxu0 0.0
  %v62 = vand.u32 %v37, 4294901760
  %63 = vmatpush1.msra.mxu0 %v62
  %64 = vmatprep.subr.mxu0 0.0
  %65 = vmatpush1.msra.mxu0 0.0
  %66 = vmatprep.subr.mxu0 0.0
  %67 = vmatpush1.msra.mxu0 0.0
  %68 = vmatprep.subr.mxu0 0.0
  %69 = vmatpush1.msra.mxu0 0.0
  %70 = vmatprep.subr.mxu0 0.0
  %71 = vmatpush1.msra.mxu0 0.0
  %72 = vmatprep.subr.mxu0 0.0
  %73 = vmatpush1.msra.mxu0 0.0
  %74 = vmatprep.subr.mxu0 0.0
  %75 = vmatpush1.msra.mxu0 0.0
  %76 = vmatprep.subr.mxu0 0.0
  %77 = vmatpush1.msra.mxu0 0.0
  %78 = vmatprep.subr.mxu0 0.0
  %79 = vmatpush1.msra.mxu0 0.0
  %80 = vmatprep.subr.mxu0 0.0
  %81 = vmatpush1.msra.mxu0 0.0
  %82 = vmatprep.subr.mxu0 0.0
  %83 = vmatpush1.msra.mxu0 0.0
  %84 = vmatprep.subr.mxu0 0.0
  %85 = vmatpush1.msra.mxu0 0.0
  %86 = vmatprep.subr.mxu0 0.0
  %87 = vmatpush1.msra.mxu0 0.0
  %88 = vmatprep.subr.mxu0 0.0
  %89 = vmatpush1.msra.mxu0 0.0
  %90 = vmatprep.subr.mxu0 0.0
  %91 = vmatpush1.msra.mxu0 0.0
  %92 = vmatprep.subr.mxu0 0.0
  %93 = vmatpush1.msra.mxu0 0.0
  %94 = vmatprep.subr.mxu0 0.0
  %95 = vmatpush1.msra.mxu0 0.0
  %96 = vmatprep.subr.mxu0 0.0
  %97 = vmatpush1.msra.mxu0 0.0
  %98 = vmatprep.subr.mxu0 0.0
  %99 = vmatpush1.msra.mxu0 0.0
  %100 = vmatprep.subr.mxu0 0.0
  %101 = vmatpush1.msra.mxu0 0.0
  %102 = vmatprep.subr.mxu0 0.0
  %103 = vmatpush1.msra.mxu0 0.0
  %104 = vmatprep.subr.mxu0 0.0
  %105 = vmatpush1.msra.mxu0 0.0
  %106 = vmatprep.subr.mxu0 0.0
  %107 = vmatpush1.msra.mxu0 0.0
  %108 = vmatprep.subr.mxu0 0.0
  %109 = vmatpush1.msra.mxu0 0.0
  %110 = vmatprep.subr.mxu0 0.0
  %111 = vmatpush1.msra.mxu0 0.0
  %112 = vmatprep.subr.mxu0 0.0
  %113 = vmatpush1.msra.mxu0 0.0
  %114 = vmatprep.subr.mxu0 0.0
  %115 = vmatpush1.msra.mxu0 0.0
  %116 = vmatprep.subr.mxu0 0.0
  %117 = vmatpush1.msra.mxu0 0.0
  %118 = vmatprep.subr.mxu0 0.0
  %119 = vmatpush1.msra.mxu0 0.0
  %120 = vmatprep.mubr.f32.mxu0 0.0
  %v121 = vand.u32 %v47, 4294901760
  %v122 = vsub.f32 %v47, %v121
  %v123 = vand.u32 %v122, 4294901760
  %v124 = vsub.f32 %v122, %v123
  %v125 = vand.u32 %v124, 4294901760
  %126 = vmatmul.mubr.f32.gmra.mrb[0].mxu0 %v125
  %v127 = vpop.f32.mrb[0].mxu0
  %v128 = vadd.f32 %v43, %v127
  %v129 = vpop.f32.mrb[0].mxu0
  %130 = vmatprep.mubr.f32.mxu0 0.0
  %v131 = vand.u32 %v50, 4294901760
  %v132 = vsub.f32 %v50, %v131
  %v133 = vand.u32 %v132, 4294901760
  %v134 = vsub.f32 %v132, %v133
  %v135 = vand.u32 %v134, 4294901760
  %136 = vmatmul.mubr.f32.gmra.mrb[0].mxu0 %v135
  %v137 = vpop.f32.mrb[0].mxu0
  %v138 = vadd.f32 %v43, %v137
  %v139 = vpop.f32.mrb[0].mxu0
  %140 = vdwg.mxu0
  %141 = vmatprep.subr.mxu0 0.0
  %v142 = vand.u32 %v34, 4294901760
  %v143 = vsub.f32 %v34, %v142
  %v144 = vand.u32 %v143, 4294901760
  %v145 = vsub.f32 %v143, %v144
  %v146 = vand.u32 %v145, 4294901760
  %147 = vmatpush1.msra.mxu0 %v146
  %148 = vmatprep.subr.mxu0 0.0
  %v149 = vand.u32 %v35, 4294901760
  %v150 = vsub.f32 %v35, %v149
  %v151 = vand.u32 %v150, 4294901760
  %v152 = vsub.f32 %v150, %v151
  %v153 = vand.u32 %v152, 4294901760
  %154 = vmatpush1.msra.mxu0 %v153
  %155 = vmatprep.subr.mxu0 0.0
  %v156 = vand.u32 %v36, 4294901760
  %v157 = vsub.f32 %v36, %v156
  %v158 = vand.u32 %v157, 4294901760
  %v159 = vsub.f32 %v157, %v158
  %v160 = vand.u32 %v159, 4294901760
  %161 = vmatpush1.msra.mxu0 %v160
  %162 = vmatprep.subr.mxu0 0.0
  %v163 = vand.u32 %v37, 4294901760
  %v164 = vsub.f32 %v37, %v163
  %v165 = vand.u32 %v164, 4294901760
  %v166 = vsub.f32 %v164, %v165
  %v167 = vand.u32 %v166, 4294901760
  %168 = vmatpush1.msra.mxu0 %v167
  %169 = vmatprep.subr.mxu0 0.0
  %170 = vmatpush1.msra.mxu0 0.0
  %171 = vmatprep.subr.mxu0 0.0
  %172 = vmatpush1.msra.mxu0 0.0
  %173 = vmatprep.subr.mxu0 0.0
  %174 = vmatpush1.msra.mxu0 0.0
  %175 = vmatprep.subr.mxu0 0.0
  %176 = vmatpush1.msra.mxu0 0.0
  %177 = vmatprep.subr.mxu0 0.0
  %178 = vmatpush1.msra.mxu0 0.0
  %179 = vmatprep.subr.mxu0 0.0
  %180 = vmatpush1.msra.mxu0 0.0
  %181 = vmatprep.subr.mxu0 0.0
  %182 = vmatpush1.msra.mxu0 0.0
  %183 = vmatprep.subr.mxu0 0.0
  %184 = vmatpush1.msra.mxu0 0.0
  %185 = vmatprep.subr.mxu0 0.0
  %186 = vmatpush1.msra.mxu0 0.0
  %187 = vmatprep.subr.mxu0 0.0
  %188 = vmatpush1.msra.mxu0 0.0
  %189 = vmatprep.subr.mxu0 0.0
  %190 = vmatpush1.msra.mxu0 0.0
  %191 = vmatprep.subr.mxu0 0.0
  %192 = vmatpush1.msra.mxu0 0.0
  %193 = vmatprep.subr.mxu0 0.0
  %194 = vmatpush1.msra.mxu0 0.0
  %195 = vmatprep.subr.mxu0 0.0
  %196 = vmatpush1.msra.mxu0 0.0
  %197 = vmatprep.subr.mxu0 0.0
  %198 = vmatpush1.msra.mxu0 0.0
  %199 = vmatprep.subr.mxu0 0.0
  %200 = vmatpush1.msra.mxu0 0.0
  %201 = vmatprep.subr.mxu0 0.0
  %202 = vmatpush1.msra.mxu0 0.0
  %203 = vmatprep.subr.mxu0 0.0
  %204 = vmatpush1.msra.mxu0 0.0
  %205 = vmatprep.subr.mxu0 0.0
  %206 = vmatpush1.msra.mxu0 0.0
  %207 = vmatprep.subr.mxu0 0.0
  %208 = vmatpush1.msra.mxu0 0.0
  %209 = vmatprep.subr.mxu0 0.0
  %210 = vmatpush1.msra.mxu0 0.0
  %211 = vmatprep.subr.mxu0 0.0
  %212 = vmatpush1.msra.mxu0 0.0
  %213 = vmatprep.subr.mxu0 0.0
  %214 = vmatpush1.msra.mxu0 0.0
  %215 = vmatprep.subr.mxu0 0.0
  %216 = vmatpush1.msra.mxu0 0.0
  %217 = vmatprep.subr.mxu0 0.0
  %218 = vmatpush1.msra.mxu0 0.0
  %219 = vmatprep.subr.mxu0 0.0
  %220 = vmatpush1.msra.mxu0 0.0
  %221 = vmatprep.subr.mxu0 0.0
  %222 = vmatpush1.msra.mxu0 0.0
  %223 = vmatprep.subr.mxu0 0.0
  %224 = vmatpush1.msra.mxu0 0.0
  %225 = vmatprep.mubr.f32.mxu0 0.0
  %v226 = vand.u32 %v47, 4294901760
  %227 = vmatmul.mubr.f32.gmra.mrb[0].mxu0 %v226
  %v228 = vpop.f32.mrb[0].mxu0
  %v229 = vadd.f32 %v128, %v228
  %v230 = vpop.f32.mrb[0].mxu0
  %231 = vmatprep.mubr.f32.mxu0 0.0
  %v232 = vand.u32 %v50, 4294901760
  %233 = vmatmul.mubr.f32.gmra.mrb[0].mxu0 %v232
  %v234 = vpop.f32.mrb[0].mxu0
  %v235 = vadd.f32 %v138, %v234
  %v236 = vpop.f32.mrb[0].mxu0
  %237 = vdwg.mxu0
  %238 = vmatprep.subr.mxu0 0.0
  %v239 = vand.u32 %v34, 4294901760
  %v240 = vsub.f32 %v34, %v239
  %241 = vmatpush1.msra.mxu0 %v240
  %242 = vmatprep.subr.mxu0 0.0
  %v243 = vand.u32 %v35, 4294901760
  %v244 = vsub.f32 %v35, %v243
  %245 = vmatpush1.msra.mxu0 %v244
  %246 = vmatprep.subr.mxu0 0.0
  %v247 = vand.u32 %v36, 4294901760
  %v248 = vsub.f32 %v36, %v247
  %249 = vmatpush1.msra.mxu0 %v248
  %250 = vmatprep.subr.mxu0 0.0
  %v251 = vand.u32 %v37, 4294901760
  %v252 = vsub.f32 %v37, %v251
  %253 = vmatpush1.msra.mxu0 %v252
  %254 = vmatprep.subr.mxu0 0.0
  %255 = vmatpush1.msra.mxu0 0.0
  %256 = vmatprep.subr.mxu0 0.0
  %257 = vmatpush1.msra.mxu0 0.0
  %258 = vmatprep.subr.mxu0 0.0
  %259 = vmatpush1.msra.mxu0 0.0
  %260 = vmatprep.subr.mxu0 0.0
  %261 = vmatpush1.msra.mxu0 0.0
  %262 = vmatprep.subr.mxu0 0.0
  %263 = vmatpush1.msra.mxu0 0.0
  %264 = vmatprep.subr.mxu0 0.0
  %265 = vmatpush1.msra.mxu0 0.0
  %266 = vmatprep.subr.mxu0 0.0
  %267 = vmatpush1.msra.mxu0 0.0
  %268 = vmatprep.subr.mxu0 0.0
  %269 = vmatpush1.msra.mxu0 0.0
  %270 = vmatprep.subr.mxu0 0.0
  %271 = vmatpush1.msra.mxu0 0.0
  %272 = vmatprep.subr.mxu0 0.0
  %273 = vmatpush1.msra.mxu0 0.0
  %274 = vmatprep.subr.mxu0 0.0
  %275 = vmatpush1.msra.mxu0 0.0
  %276 = vmatprep.subr.mxu0 0.0
  %277 = vmatpush1.msra.mxu0 0.0
  %278 = vmatprep.subr.mxu0 0.0
  %279 = vmatpush1.msra.mxu0 0.0
  %280 = vmatprep.subr.mxu0 0.0
  %281 = vmatpush1.msra.mxu0 0.0
  %282 = vmatprep.subr.mxu0 0.0
  %283 = vmatpush1.msra.mxu0 0.0
  %284 = vmatprep.subr.mxu0 0.0
  %285 = vmatpush1.msra.mxu0 0.0
  %286 = vmatprep.subr.mxu0 0.0
  %287 = vmatpush1.msra.mxu0 0.0
  %288 = vmatprep.subr.mxu0 0.0
  %289 = vmatpush1.msra.mxu0 0.0
  %290 = vmatprep.subr.mxu0 0.0
  %291 = vmatpush1.msra.mxu0 0.0
  %292 = vmatprep.subr.mxu0 0.0
  %293 = vmatpush1.msra.mxu0 0.0
  %294 = vmatprep.subr.mxu0 0.0
  %295 = vmatpush1.msra.mxu0 0.0
  %296 = vmatprep.subr.mxu0 0.0
  %297 = vmatpush1.msra.mxu0 0.0
  %298 = vmatprep.subr.mxu0 0.0
  %299 = vmatpush1.msra.mxu0 0.0
  %300 = vmatprep.subr.mxu0 0.0
  %301 = vmatpush1.msra.mxu0 0.0
  %302 = vmatprep.subr.mxu0 0.0
  %303 = vmatpush1.msra.mxu0 0.0
  %304 = vmatprep.subr.mxu0 0.0
  %305 = vmatpush1.msra.mxu0 0.0
  %306 = vmatprep.subr.mxu0 0.0
  %307 = vmatpush1.msra.mxu0 0.0
  %308 = vmatprep.subr.mxu0 0.0
  %309 = vmatpush1.msra.mxu0 0.0
  %310 = vmatprep.mubr.f32.mxu0 0.0
  %v311 = vand.u32 %v47, 4294901760
  %v312 = vsub.f32 %v47, %v311
  %313 = vmatmul.mubr.f32.gmra.mrb[0].mxu0 %v312
  %v314 = vpop.f32.mrb[0].mxu0
  %v315 = vadd.f32 %v229, %v314
  %v316 = vpop.f32.mrb[0].mxu0
  %317 = vmatprep.mubr.f32.mxu0 0.0
  %v318 = vand.u32 %v50, 4294901760
  %v319 = vsub.f32 %v50, %v318
  %320 = vmatmul.mubr.f32.gmra.mrb[0].mxu0 %v319
  %v321 = vpop.f32.mrb[0].mxu0
  %v322 = vadd.f32 %v235, %v321
  %v323 = vpop.f32.mrb[0].mxu0
  %324 = vdwg.mxu0
  %325 = vmatprep.subr.mxu0 0.0
  %v326 = vand.u32 %v34, 4294901760
  %327 = vmatpush1.msra.mxu0 %v326
  %328 = vmatprep.subr.mxu0 0.0
  %v329 = vand.u32 %v35, 4294901760
  %330 = vmatpush1.msra.mxu0 %v329
  %331 = vmatprep.subr.mxu0 0.0
  %v332 = vand.u32 %v36, 4294901760
  %333 = vmatpush1.msra.mxu0 %v332
  %334 = vmatprep.subr.mxu0 0.0
  %v335 = vand.u32 %v37, 4294901760
  %336 = vmatpush1.msra.mxu0 %v335
  %337 = vmatprep.subr.mxu0 0.0
  %338 = vmatpush1.msra.mxu0 0.0
  %339 = vmatprep.subr.mxu0 0.0
  %340 = vmatpush1.msra.mxu0 0.0
  %341 = vmatprep.subr.mxu0 0.0
  %342 = vmatpush1.msra.mxu0 0.0
  %343 = vmatprep.subr.mxu0 0.0
  %344 = vmatpush1.msra.mxu0 0.0
  %345 = vmatprep.subr.mxu0 0.0
  %346 = vmatpush1.msra.mxu0 0.0
  %347 = vmatprep.subr.mxu0 0.0
  %348 = vmatpush1.msra.mxu0 0.0
  %349 = vmatprep.subr.mxu0 0.0
  %350 = vmatpush1.msra.mxu0 0.0
  %351 = vmatprep.subr.mxu0 0.0
  %352 = vmatpush1.msra.mxu0 0.0
  %353 = vmatprep.subr.mxu0 0.0
  %354 = vmatpush1.msra.mxu0 0.0
  %355 = vmatprep.subr.mxu0 0.0
  %356 = vmatpush1.msra.mxu0 0.0
  %357 = vmatprep.subr.mxu0 0.0
  %358 = vmatpush1.msra.mxu0 0.0
  %359 = vmatprep.subr.mxu0 0.0
  %360 = vmatpush1.msra.mxu0 0.0
  %361 = vmatprep.subr.mxu0 0.0
  %362 = vmatpush1.msra.mxu0 0.0
  %363 = vmatprep.subr.mxu0 0.0
  %364 = vmatpush1.msra.mxu0 0.0
  %365 = vmatprep.subr.mxu0 0.0
  %366 = vmatpush1.msra.mxu0 0.0
  %367 = vmatprep.subr.mxu0 0.0
  %368 = vmatpush1.msra.mxu0 0.0
  %369 = vmatprep.subr.mxu0 0.0
  %370 = vmatpush1.msra.mxu0 0.0
  %371 = vmatprep.subr.mxu0 0.0
  %372 = vmatpush1.msra.mxu0 0.0
  %373 = vmatprep.subr.mxu0 0.0
  %374 = vmatpush1.msra.mxu0 0.0
  %375 = vmatprep.subr.mxu0 0.0
  %376 = vmatpush1.msra.mxu0 0.0
  %377 = vmatprep.subr.mxu0 0.0
  %378 = vmatpush1.msra.mxu0 0.0
  %379 = vmatprep.subr.mxu0 0.0
  %380 = vmatpush1.msra.mxu0 0.0
  %381 = vmatprep.subr.mxu0 0.0
  %382 = vmatpush1.msra.mxu0 0.0
  %383 = vmatprep.subr.mxu0 0.0
  %384 = vmatpush1.msra.mxu0 0.0
  %385 = vmatprep.subr.mxu0 0.0
  %386 = vmatpush1.msra.mxu0 0.0
  %387 = vmatprep.subr.mxu0 0.0
  %388 = vmatpush1.msra.mxu0 0.0
  %389 = vmatprep.subr.mxu0 0.0
  %390 = vmatpush1.msra.mxu0 0.0
  %391 = vmatprep.subr.mxu0 0.0
  %392 = vmatpush1.msra.mxu0 0.0
  %393 = vmatprep.mubr.f32.mxu0 0.0
  %v394 = vand.u32 %v47, 4294901760
  %v395 = vsub.f32 %v47, %v394
  %v396 = vand.u32 %v395, 4294901760
  %397 = vmatmul.mubr.f32.gmra.mrb[0].mxu0 %v396
  %v398 = vpop.f32.mrb[0].mxu0
  %v399 = vadd.f32 %v315, %v398
  %v400 = vpop.f32.mrb[0].mxu0
  %401 = vmatprep.mubr.f32.mxu0 0.0
  %v402 = vand.u32 %v50, 4294901760
  %v403 = vsub.f32 %v50, %v402
  %v404 = vand.u32 %v403, 4294901760
  %405 = vmatmul.mubr.f32.gmra.mrb[0].mxu0 %v404
  %v406 = vpop.f32.mrb[0].mxu0
  %v407 = vadd.f32 %v322, %v406
  %v408 = vpop.f32.mrb[0].mxu0
  %409 = vdwg.mxu0
  %410 = vmatprep.subr.mxu0 0.0
  %v411 = vand.u32 %v34, 4294901760
  %v412 = vsub.f32 %v34, %v411
  %v413 = vand.u32 %v412, 4294901760
  %414 = vmatpush1.msra.mxu0 %v413
  %415 = vmatprep.subr.mxu0 0.0
  %v416 = vand.u32 %v35, 4294901760
  %v417 = vsub.f32 %v35, %v416
  %v418 = vand.u32 %v417, 4294901760
  %419 = vmatpush1.msra.mxu0 %v418
  %420 = vmatprep.subr.mxu0 0.0
  %v421 = vand.u32 %v36, 4294901760
  %v422 = vsub.f32 %v36, %v421
  %v423 = vand.u32 %v422, 4294901760
  %424 = vmatpush1.msra.mxu0 %v423
  %425 = vmatprep.subr.mxu0 0.0
  %v426 = vand.u32 %v37, 4294901760
  %v427 = vsub.f32 %v37, %v426
  %v428 = vand.u32 %v427, 4294901760
  %429 = vmatpush1.msra.mxu0 %v428
  %430 = vmatprep.subr.mxu0 0.0
  %431 = vmatpush1.msra.mxu0 0.0
  %432 = vmatprep.subr.mxu0 0.0
  %433 = vmatpush1.msra.mxu0 0.0
  %434 = vmatprep.subr.mxu0 0.0
  %435 = vmatpush1.msra.mxu0 0.0
  %436 = vmatprep.subr.mxu0 0.0
  %437 = vmatpush1.msra.mxu0 0.0
  %438 = vmatprep.subr.mxu0 0.0
  %439 = vmatpush1.msra.mxu0 0.0
  %440 = vmatprep.subr.mxu0 0.0
  %441 = vmatpush1.msra.mxu0 0.0
  %442 = vmatprep.subr.mxu0 0.0
  %443 = vmatpush1.msra.mxu0 0.0
  %444 = vmatprep.subr.mxu0 0.0
  %445 = vmatpush1.msra.mxu0 0.0
  %446 = vmatprep.subr.mxu0 0.0
  %447 = vmatpush1.msra.mxu0 0.0
  %448 = vmatprep.subr.mxu0 0.0
  %449 = vmatpush1.msra.mxu0 0.0
  %450 = vmatprep.subr.mxu0 0.0
  %451 = vmatpush1.msra.mxu0 0.0
  %452 = vmatprep.subr.mxu0 0.0
  %453 = vmatpush1.msra.mxu0 0.0
  %454 = vmatprep.subr.mxu0 0.0
  %455 = vmatpush1.msra.mxu0 0.0
  %456 = vmatprep.subr.mxu0 0.0
  %457 = vmatpush1.msra.mxu0 0.0
  %458 = vmatprep.subr.mxu0 0.0
  %459 = vmatpush1.msra.mxu0 0.0
  %460 = vmatprep.subr.mxu0 0.0
  %461 = vmatpush1.msra.mxu0 0.0
  %462 = vmatprep.subr.mxu0 0.0
  %463 = vmatpush1.msra.mxu0 0.0
  %464 = vmatprep.subr.mxu0 0.0
  %465 = vmatpush1.msra.mxu0 0.0
  %466 = vmatprep.subr.mxu0 0.0
  %467 = vmatpush1.msra.mxu0 0.0
  %468 = vmatprep.subr.mxu0 0.0
  %469 = vmatpush1.msra.mxu0 0.0
  %470 = vmatprep.subr.mxu0 0.0
  %471 = vmatpush1.msra.mxu0 0.0
  %472 = vmatprep.subr.mxu0 0.0
  %473 = vmatpush1.msra.mxu0 0.0
  %474 = vmatprep.subr.mxu0 0.0
  %475 = vmatpush1.msra.mxu0 0.0
  %476 = vmatprep.subr.mxu0 0.0
  %477 = vmatpush1.msra.mxu0 0.0
  %478 = vmatprep.subr.mxu0 0.0
  %479 = vmatpush1.msra.mxu0 0.0
  %480 = vmatprep.subr.mxu0 0.0
  %481 = vmatpush1.msra.mxu0 0.0
  %482 = vmatprep.subr.mxu0 0.0
  %483 = vmatpush1.msra.mxu0 0.0
  %484 = vmatprep.subr.mxu0 0.0
  %485 = vmatpush1.msra.mxu0 0.0
  %486 = vmatprep.mubr.f32.mxu0 0.0
  %v487 = vand.u32 %v47, 4294901760
  %488 = vmatmul.mubr.f32.gmra.mrb[0].mxu0 %v487
  %v489 = vpop.f32.mrb[0].mxu0
  %v490 = vadd.f32 %v399, %v489
  %v491 = vpop.f32.mrb[0].mxu0
  %492 = vmatprep.mubr.f32.mxu0 0.0
  %v493 = vand.u32 %v50, 4294901760
  %494 = vmatmul.mubr.f32.gmra.mrb[0].mxu0 %v493
  %v495 = vpop.f32.mrb[0].mxu0
  %v496 = vadd.f32 %v407, %v495
  %v497 = vpop.f32.mrb[0].mxu0
  %498 = vdwg.mxu0
  %499 = vmatprep.subr.mxu0 0.0
  %v500 = vand.u32 %v34, 4294901760
  %501 = vmatpush1.msra.mxu0 %v500
  %502 = vmatprep.subr.mxu0 0.0
  %v503 = vand.u32 %v35, 4294901760
  %504 = vmatpush1.msra.mxu0 %v503
  %505 = vmatprep.subr.mxu0 0.0
  %v506 = vand.u32 %v36, 4294901760
  %507 = vmatpush1.msra.mxu0 %v506
  %508 = vmatprep.subr.mxu0 0.0
  %v509 = vand.u32 %v37, 4294901760
  %510 = vmatpush1.msra.mxu0 %v509
  %511 = vmatprep.subr.mxu0 0.0
  %512 = vmatpush1.msra.mxu0 0.0
  %513 = vmatprep.subr.mxu0 0.0
  %514 = vmatpush1.msra.mxu0 0.0
  %515 = vmatprep.subr.mxu0 0.0
  %516 = vmatpush1.msra.mxu0 0.0
  %517 = vmatprep.subr.mxu0 0.0
  %518 = vmatpush1.msra.mxu0 0.0
  %519 = vmatprep.subr.mxu0 0.0
  %520 = vmatpush1.msra.mxu0 0.0
  %521 = vmatprep.subr.mxu0 0.0
  %522 = vmatpush1.msra.mxu0 0.0
  %523 = vmatprep.subr.mxu0 0.0
  %524 = vmatpush1.msra.mxu0 0.0
  %525 = vmatprep.subr.mxu0 0.0
  %526 = vmatpush1.msra.mxu0 0.0
  %527 = vmatprep.subr.mxu0 0.0
  %528 = vmatpush1.msra.mxu0 0.0
  %529 = vmatprep.subr.mxu0 0.0
  %530 = vmatpush1.msra.mxu0 0.0
  %531 = vmatprep.subr.mxu0 0.0
  %532 = vmatpush1.msra.mxu0 0.0
  %533 = vmatprep.subr.mxu0 0.0
  %534 = vmatpush1.msra.mxu0 0.0
  %535 = vmatprep.subr.mxu0 0.0
  %536 = vmatpush1.msra.mxu0 0.0
  %537 = vmatprep.subr.mxu0 0.0
  %538 = vmatpush1.msra.mxu0 0.0
  %539 = vmatprep.subr.mxu0 0.0
  %540 = vmatpush1.msra.mxu0 0.0
  %541 = vmatprep.subr.mxu0 0.0
  %542 = vmatpush1.msra.mxu0 0.0
  %543 = vmatprep.subr.mxu0 0.0
  %544 = vmatpush1.msra.mxu0 0.0
  %545 = vmatprep.subr.mxu0 0.0
  %546 = vmatpush1.msra.mxu0 0.0
  %547 = vmatprep.subr.mxu0 0.0
  %548 = vmatpush1.msra.mxu0 0.0
  %549 = vmatprep.subr.mxu0 0.0
  %550 = vmatpush1.msra.mxu0 0.0
  %551 = vmatprep.subr.mxu0 0.0
  %552 = vmatpush1.msra.mxu0 0.0
  %553 = vmatprep.subr.mxu0 0.0
  %554 = vmatpush1.msra.mxu0 0.0
  %555 = vmatprep.subr.mxu0 0.0
  %556 = vmatpush1.msra.mxu0 0.0
  %557 = vmatprep.subr.mxu0 0.0
  %558 = vmatpush1.msra.mxu0 0.0
  %559 = vmatprep.subr.mxu0 0.0
  %560 = vmatpush1.msra.mxu0 0.0
  %561 = vmatprep.subr.mxu0 0.0
  %562 = vmatpush1.msra.mxu0 0.0
  %563 = vmatprep.subr.mxu0 0.0
  %564 = vmatpush1.msra.mxu0 0.0
  %565 = vmatprep.subr.mxu0 0.0
  %566 = vmatpush1.msra.mxu0 0.0
  %567 = vmatprep.mubr.f32.mxu0 0.0
  %v568 = vand.u32 %v47, 4294901760
  %569 = vmatmul.mubr.f32.gmra.mrb[0].mxu0 %v568
  %v570 = vpop.f32.mrb[0].mxu0
  %v571 = vadd.f32 %v490, %v570
  %v572 = vpop.f32.mrb[0].mxu0
  %573 = vmatprep.mubr.f32.mxu0 0.0
  %v574 = vand.u32 %v50, 4294901760
  %575 = vmatmul.mubr.f32.gmra.mrb[0].mxu0 %v574
  %v576 = vpop.f32.mrb[0].mxu0
  %v577 = vadd.f32 %v496, %v576
  %v578 = vpop.f32.mrb[0].mxu0
  %579 = vdwg.mxu0
  %v580 = vmax.f32 %v571, 0.0
  %v581 = vmax.f32 %v577, 0.0
  %v582 = vld [vmem:[%s3] sm:$0xff]
  %v583 = vld [vmem:[%s3 + $0x8] sm:$0xff]
  %v584 = vld [vmem:[%s3 + $0x10] sm:$0xff]
  %v585 = vld [vmem:[%s3 + $0x18] sm:$0xff]
  %v586 = vld [vmem:[%s3 + $0x20] sm:$0xff]
  %v587 = vld [vmem:[%s3 + $0x28] sm:$0xff]
  %v588 = vld [vmem:[%s3 + $0x30] sm:$0xff]
  %v589 = vld [vmem:[%s3 + $0x38] sm:$0xff]
  %v590 = vld [vmem:[%s4] sm:$0x1]
  %v592 = vlaneseq
  %v593 = vshrl.u32 %v592, 7
  %v594 = vsub.s32 0, %v593
  %v595 = vrot.slane %v590, %v594
  %vm597 = vcmask 523264
  %v599 = vsel %vm597, %v580, 0
  %v602 = vsel %vm597, %v581, 0
  %604 = vmatprep.subr.mxu0 0.0
  %v605 = vand.u32 %v582, 4294901760
  %606 = vmatpush1.msra.mxu0 %v605
  %607 = vmatprep.subr.mxu0 0.0
  %v608 = vand.u32 %v583, 4294901760
  %609 = vmatpush1.msra.mxu0 %v608
  %610 = vmatprep.subr.mxu0 0.0
  %v611 = vand.u32 %v584, 4294901760
  %612 = vmatpush1.msra.mxu0 %v611
  %613 = vmatprep.subr.mxu0 0.0
  %v614 = vand.u32 %v585, 4294901760
  %615 = vmatpush1.msra.mxu0 %v614
  %616 = vmatprep.subr.mxu0 0.0
  %v617 = vand.u32 %v586, 4294901760
  %618 = vmatpush1.msra.mxu0 %v617
  %619 = vmatprep.subr.mxu0 0.0
  %v620 = vand.u32 %v587, 4294901760
  %621 = vmatpush1.msra.mxu0 %v620
  %622 = vmatprep.subr.mxu0 0.0
  %v623 = vand.u32 %v588, 4294901760
  %624 = vmatpush1.msra.mxu0 %v623
  %625 = vmatprep.subr.mxu0 0.0
  %v626 = vand.u32 %v589, 4294901760
  %627 = vmatpush1.msra.mxu0 %v626
  %628 = vmatprep.subr.mxu0 0.0
  %629 = vmatpush1.msra.mxu0 0.0
  %630 = vmatprep.subr.mxu0 0.0
  %631 = vmatpush1.msra.mxu0 0.0
  %632 = vmatprep.subr.mxu0 0.0
  %633 = vmatpush1.msra.mxu0 0.0
  %634 = vmatprep.subr.mxu0 0.0
  %635 = vmatpush1.msra.mxu0 0.0
  %636 = vmatprep.subr.mxu0 0.0
  %637 = vmatpush1.msra.mxu0 0.0
  %638 = vmatprep.subr.mxu0 0.0
  %639 = vmatpush1.msra.mxu0 0.0
  %640 = vmatprep.subr.mxu0 0.0
  %641 = vmatpush1.msra.mxu0 0.0
  %642 = vmatprep.subr.mxu0 0.0
  %643 = vmatpush1.msra.mxu0 0.0
  %644 = vmatprep.subr.mxu0 0.0
  %645 = vmatpush1.msra.mxu0 0.0
  %646 = vmatprep.subr.mxu0 0.0
  %647 = vmatpush1.msra.mxu0 0.0
  %648 = vmatprep.subr.mxu0 0.0
  %649 = vmatpush1.msra.mxu0 0.0
  %650 = vmatprep.subr.mxu0 0.0
  %651 = vmatpush1.msra.mxu0 0.0
  %652 = vmatprep.subr.mxu0 0.0
  %653 = vmatpush1.msra.mxu0 0.0
  %654 = vmatprep.subr.mxu0 0.0
  %655 = vmatpush1.msra.mxu0 0.0
  %656 = vmatprep.subr.mxu0 0.0
  %657 = vmatpush1.msra.mxu0 0.0
  %658 = vmatprep.subr.mxu0 0.0
  %659 = vmatpush1.msra.mxu0 0.0
  %660 = vmatprep.subr.mxu0 0.0
  %661 = vmatpush1.msra.mxu0 0.0
  %662 = vmatprep.subr.mxu0 0.0
  %663 = vmatpush1.msra.mxu0 0.0
  %664 = vmatprep.subr.mxu0 0.0
  %665 = vmatpush1.msra.mxu0 0.0
  %666 = vmatprep.subr.mxu0 0.0
  %667 = vmatpush1.msra.mxu0 0.0
  %668 = vmatprep.subr.mxu0 0.0
  %669 = vmatpush1.msra.mxu0 0.0
  %670 = vmatprep.subr.mxu0 0.0
  %671 = vmatpush1.msra.mxu0 0.0
  %672 = vmatprep.subr.mxu0 0.0
  %673 = vmatpush1.msra.mxu0 0.0
  %674 = vmatprep.subr.mxu0 0.0
  %675 = vmatpush1.msra.mxu0 0.0
  %676 = vmatprep.mubr.f32.mxu0 0.0
  %v677 = vand.u32 %v599, 4294901760
  %v678 = vsub.f32 %v599, %v677
  %v679 = vand.u32 %v678, 4294901760
  %v680 = vsub.f32 %v678, %v679
  %v681 = vand.u32 %v680, 4294901760
  %682 = vmatmul.mubr.f32.gmra.mrb[0].mxu0 %v681
  %v683 = vpop.f32.mrb[0].mxu0
  %v684 = vadd.f32 %v595, %v683
  %v685 = vpop.f32.mrb[0].mxu0
  %686 = vmatprep.mubr.f32.mxu0 0.0
  %v687 = vand.u32 %v602, 4294901760
  %v688 = vsub.f32 %v602, %v687
  %v689 = vand.u32 %v688, 4294901760
  %v690 = vsub.f32 %v688, %v689
  %v691 = vand.u32 %v690, 4294901760
  %692 = vmatmul.mubr.f32.gmra.mrb[0].mxu0 %v691
  %v693 = vpop.f32.mrb[0].mxu0
  %v694 = vadd.f32 %v595, %v693
  %v695 = vpop.f32.mrb[0].mxu0
  %696 = vdwg.mxu0
  %697 = vmatprep.subr.mxu0 0.0
  %v698 = vand.u32 %v582, 4294901760
  %v699 = vsub.f32 %v582, %v698
  %v700 = vand.u32 %v699, 4294901760
  %v701 = vsub.f32 %v699, %v700
  %v702 = vand.u32 %v701, 4294901760
  %703 = vmatpush1.msra.mxu0 %v702
  %704 = vmatprep.subr.mxu0 0.0
  %v705 = vand.u32 %v583, 4294901760
  %v706 = vsub.f32 %v583, %v705
  %v707 = vand.u32 %v706, 4294901760
  %v708 = vsub.f32 %v706, %v707
  %v709 = vand.u32 %v708, 4294901760
  %710 = vmatpush1.msra.mxu0 %v709
  %711 = vmatprep.subr.mxu0 0.0
  %v712 = vand.u32 %v584, 4294901760
  %v713 = vsub.f32 %v584, %v712
  %v714 = vand.u32 %v713, 4294901760
  %v715 = vsub.f32 %v713, %v714
  %v716 = vand.u32 %v715, 4294901760
  %717 = vmatpush1.msra.mxu0 %v716
  %718 = vmatprep.subr.mxu0 0.0
  %v719 = vand.u32 %v585, 4294901760
  %v720 = vsub.f32 %v585, %v719
  %v721 = vand.u32 %v720, 4294901760
  %v722 = vsub.f32 %v720, %v721
  %v723 = vand.u32 %v722, 4294901760
  %724 = vmatpush1.msra.mxu0 %v723
  %725 = vmatprep.subr.mxu0 0.0
  %v726 = vand.u32 %v586, 4294901760
  %v727 = vsub.f32 %v586, %v726
  %v728 = vand.u32 %v727, 4294901760
  %v729 = vsub.f32 %v727, %v728
  %v730 = vand.u32 %v729, 4294901760
  %731 = vmatpush1.msra.mxu0 %v730
  %732 = vmatprep.subr.mxu0 0.0
  %v733 = vand.u32 %v587, 4294901760
  %v734 = vsub.f32 %v587, %v733
  %v735 = vand.u32 %v734, 4294901760
  %v736 = vsub.f32 %v734, %v735
  %v737 = vand.u32 %v736, 4294901760
  %738 = vmatpush1.msra.mxu0 %v737
  %739 = vmatprep.subr.mxu0 0.0
  %v740 = vand.u32 %v588, 4294901760
  %v741 = vsub.f32 %v588, %v740
  %v742 = vand.u32 %v741, 4294901760
  %v743 = vsub.f32 %v741, %v742
  %v744 = vand.u32 %v743, 4294901760
  %745 = vmatpush1.msra.mxu0 %v744
  %746 = vmatprep.subr.mxu0 0.0
  %v747 = vand.u32 %v589, 4294901760
  %v748 = vsub.f32 %v589, %v747
  %v749 = vand.u32 %v748, 4294901760
  %v750 = vsub.f32 %v748, %v749
  %v751 = vand.u32 %v750, 4294901760
  %752 = vmatpush1.msra.mxu0 %v751
  %753 = vmatprep.subr.mxu0 0.0
  %754 = vmatpush1.msra.mxu0 0.0
  %755 = vmatprep.subr.mxu0 0.0
  %756 = vmatpush1.msra.mxu0 0.0
  %757 = vmatprep.subr.mxu0 0.0
  %758 = vmatpush1.msra.mxu0 0.0
  %759 = vmatprep.subr.mxu0 0.0
  %760 = vmatpush1.msra.mxu0 0.0
  %761 = vmatprep.subr.mxu0 0.0
  %762 = vmatpush1.msra.mxu0 0.0
  %763 = vmatprep.subr.mxu0 0.0
  %764 = vmatpush1.msra.mxu0 0.0
  %765 = vmatprep.subr.mxu0 0.0
  %766 = vmatpush1.msra.mxu0 0.0
  %767 = vmatprep.subr.mxu0 0.0
  %768 = vmatpush1.msra.mxu0 0.0
  %769 = vmatprep.subr.mxu0 0.0
  %770 = vmatpush1.msra.mxu0 0.0
  %771 = vmatprep.subr.mxu0 0.0
  %772 = vmatpush1.msra.mxu0 0.0
  %773 = vmatprep.subr.mxu0 0.0
  %774 = vmatpush1.msra.mxu0 0.0
  %775 = vmatprep.subr.mxu0 0.0
  %776 = vmatpush1.msra.mxu0 0.0
  %777 = vmatprep.subr.mxu0 0.0
  %778 = vmatpush1.msra.mxu0 0.0
  %779 = vmatprep.subr.mxu0 0.0
  %780 = vmatpush1.msra.mxu0 0.0
  %781 = vmatprep.subr.mxu0 0.0
  %782 = vmatpush1.msra.mxu0 0.0
  %783 = vmatprep.subr.mxu0 0.0
  %784 = vmatpush1.msra.mxu0 0.0
  %785 = vmatprep.subr.mxu0 0.0
  %786 = vmatpush1.msra.mxu0 0.0
  %787 = vmatprep.subr.mxu0 0.0
  %788 = vmatpush1.msra.mxu0 0.0
  %789 = vmatprep.subr.mxu0 0.0
  %790 = vmatpush1.msra.mxu0 0.0
  %791 = vmatprep.subr.mxu0 0.0
  %792 = vmatpush1.msra.mxu0 0.0
  %793 = vmatprep.subr.mxu0 0.0
  %794 = vmatpush1.msra.mxu0 0.0
  %795 = vmatprep.subr.mxu0 0.0
  %796 = vmatpush1.msra.mxu0 0.0
  %797 = vmatprep.subr.mxu0 0.0
  %798 = vmatpush1.msra.mxu0 0.0
  %799 = vmatprep.subr.mxu0 0.0
  %800 = vmatpush1.msra.mxu0 0.0
  %801 = vmatprep.mubr.f32.mxu0 0.0
  %v802 = vand.u32 %v599, 4294901760
  %803 = vmatmul.mubr.f32.gmra.mrb[0].mxu0 %v802
  %v804 = vpop.f32.mrb[0].mxu0
  %v805 = vadd.f32 %v684, %v804
  %v806 = vpop.f32.mrb[0].mxu0
  %807 = vmatprep.mubr.f32.mxu0 0.0
  %v808 = vand.u32 %v602, 4294901760
  %809 = vmatmul.mubr.f32.gmra.mrb[0].mxu0 %v808
  %v810 = vpop.f32.mrb[0].mxu0
  %v811 = vadd.f32 %v694, %v810
  %v812 = vpop.f32.mrb[0].mxu0
  %813 = vdwg.mxu0
  %814 = vmatprep.subr.mxu0 0.0
  %v815 = vand.u32 %v582, 4294901760
  %v816 = vsub.f32 %v582, %v815
  %817 = vmatpush1.msra.mxu0 %v816
  %818 = vmatprep.subr.mxu0 0.0
  %v819 = vand.u32 %v583, 4294901760
  %v820 = vsub.f32 %v583, %v819
  %821 = vmatpush1.msra.mxu0 %v820
  %822 = vmatprep.subr.mxu0 0.0
  %v823 = vand.u32 %v584, 4294901760
  %v824 = vsub.f32 %v584, %v823
  %825 = vmatpush1.msra.mxu0 %v824
  %826 = vmatprep.subr.mxu0 0.0
  %v827 = vand.u32 %v585, 4294901760
  %v828 = vsub.f32 %v585, %v827
  %829 = vmatpush1.msra.mxu0 %v828
  %830 = vmatprep.subr.mxu0 0.0
  %v831 = vand.u32 %v586, 4294901760
  %v832 = vsub.f32 %v586, %v831
  %833 = vmatpush1.msra.mxu0 %v832
  %834 = vmatprep.subr.mxu0 0.0
  %v835 = vand.u32 %v587, 4294901760
  %v836 = vsub.f32 %v587, %v835
  %837 = vmatpush1.msra.mxu0 %v836
  %838 = vmatprep.subr.mxu0 0.0
  %v839 = vand.u32 %v588, 4294901760
  %v840 = vsub.f32 %v588, %v839
  %841 = vmatpush1.msra.mxu0 %v840
  %842 = vmatprep.subr.mxu0 0.0
  %v843 = vand.u32 %v589, 4294901760
  %v844 = vsub.f32 %v589, %v843
  %845 = vmatpush1.msra.mxu0 %v844
  %846 = vmatprep.subr.mxu0 0.0
  %847 = vmatpush1.msra.mxu0 0.0
  %848 = vmatprep.subr.mxu0 0.0
  %849 = vmatpush1.msra.mxu0 0.0
  %850 = vmatprep.subr.mxu0 0.0
  %851 = vmatpush1.msra.mxu0 0.0
  %852 = vmatprep.subr.mxu0 0.0
  %853 = vmatpush1.msra.mxu0 0.0
  %854 = vmatprep.subr.mxu0 0.0
  %855 = vmatpush1.msra.mxu0 0.0
  %856 = vmatprep.subr.mxu0 0.0
  %857 = vmatpush1.msra.mxu0 0.0
  %858 = vmatprep.subr.mxu0 0.0
  %859 = vmatpush1.msra.mxu0 0.0
  %860 = vmatprep.subr.mxu0 0.0
  %861 = vmatpush1.msra.mxu0 0.0
  %862 = vmatprep.subr.mxu0 0.0
  %863 = vmatpush1.msra.mxu0 0.0
  %864 = vmatprep.subr.mxu0 0.0
  %865 = vmatpush1.msra.mxu0 0.0
  %866 = vmatprep.subr.mxu0 0.0
  %867 = vmatpush1.msra.mxu0 0.0
  %868 = vmatprep.subr.mxu0 0.0
  %869 = vmatpush1.msra.mxu0 0.0
  %870 = vmatprep.subr.mxu0 0.0
  %871 = vmatpush1.msra.mxu0 0.0
  %872 = vmatprep.subr.mxu0 0.0
  %873 = vmatpush1.msra.mxu0 0.0
  %874 = vmatprep.subr.mxu0 0.0
  %875 = vmatpush1.msra.mxu0 0.0
  %876 = vmatprep.subr.mxu0 0.0
  %877 = vmatpush1.msra.mxu0 0.0
  %878 = vmatprep.subr.mxu0 0.0
  %879 = vmatpush1.msra.mxu0 0.0
  %880 = vmatprep.subr.mxu0 0.0
  %881 = vmatpush1.msra.mxu0 0.0
  %882 = vmatprep.subr.mxu0 0.0
  %883 = vmatpush1.msra.mxu0 0.0
  %884 = vmatprep.subr.mxu0 0.0
  %885 = vmatpush1.msra.mxu0 0.0
  %886 = vmatprep.subr.mxu0 0.0
  %887 = vmatpush1.msra.mxu0 0.0
  %888 = vmatprep.subr.mxu0 0.0
  %889 = vmatpush1.msra.mxu0 0.0
  %890 = vmatprep.subr.mxu0 0.0
  %891 = vmatpush1.msra.mxu0 0.0
  %892 = vmatprep.subr.mxu0 0.0
  %893 = vmatpush1.msra.mxu0 0.0
  %894 = vmatprep.mubr.f32.mxu0 0.0
  %v895 = vand.u32 %v599, 4294901760
  %v896 = vsub.f32 %v599, %v895
  %897 = vmatmul.mubr.f32.gmra.mrb[0].mxu0 %v896
  %v898 = vpop.f32.mrb[0].mxu0
  %v899 = vadd.f32 %v805, %v898
  %v900 = vpop.f32.mrb[0].mxu0
  %901 = vmatprep.mubr.f32.mxu0 0.0
  %v902 = vand.u32 %v602, 4294901760
  %v903 = vsub.f32 %v602, %v902
  %904 = vmatmul.mubr.f32.gmra.mrb[0].mxu0 %v903
  %v905 = vpop.f32.mrb[0].mxu0
  %v906 = vadd.f32 %v811, %v905
  %v907 = vpop.f32.mrb[0].mxu0
  %908 = vdwg.mxu0
  %909 = vmatprep.subr.mxu0 0.0
  %v910 = vand.u32 %v582, 4294901760
  %911 = vmatpush1.msra.mxu0 %v910
  %912 = vmatprep.subr.mxu0 0.0
  %v913 = vand.u32 %v583, 4294901760
  %914 = vmatpush1.msra.mxu0 %v913
  %915 = vmatprep.subr.mxu0 0.0
  %v916 = vand.u32 %v584, 4294901760
  %917 = vmatpush1.msra.mxu0 %v916
  %918 = vmatprep.subr.mxu0 0.0
  %v919 = vand.u32 %v585, 4294901760
  %920 = vmatpush1.msra.mxu0 %v919
  %921 = vmatprep.subr.mxu0 0.0
  %v922 = vand.u32 %v586, 4294901760
  %923 = vmatpush1.msra.mxu0 %v922
  %924 = vmatprep.subr.mxu0 0.0
  %v925 = vand.u32 %v587, 4294901760
  %926 = vmatpush1.msra.mxu0 %v925
  %927 = vmatprep.subr.mxu0 0.0
  %v928 = vand.u32 %v588, 4294901760
  %929 = vmatpush1.msra.mxu0 %v928
  %930 = vmatprep.subr.mxu0 0.0
  %v931 = vand.u32 %v589, 4294901760
  %932 = vmatpush1.msra.mxu0 %v931
  %933 = vmatprep.subr.mxu0 0.0
  %934 = vmatpush1.msra.mxu0 0.0
  %935 = vmatprep.subr.mxu0 0.0
  %936 = vmatpush1.msra.mxu0 0.0
  %937 = vmatprep.subr.mxu0 0.0
  %938 = vmatpush1.msra.mxu0 0.0
  %939 = vmatprep.subr.mxu0 0.0
  %940 = vmatpush1.msra.mxu0 0.0
  %941 = vmatprep.subr.mxu0 0.0
  %942 = vmatpush1.msra.mxu0 0.0
  %943 = vmatprep.subr.mxu0 0.0
  %944 = vmatpush1.msra.mxu0 0.0
  %945 = vmatprep.subr.mxu0 0.0
  %946 = vmatpush1.msra.mxu0 0.0
  %947 = vmatprep.subr.mxu0 0.0
  %948 = vmatpush1.msra.mxu0 0.0
  %949 = vmatprep.subr.mxu0 0.0
  %950 = vmatpush1.msra.mxu0 0.0
  %951 = vmatprep.subr.mxu0 0.0
  %952 = vmatpush1.msra.mxu0 0.0
  %953 = vmatprep.subr.mxu0 0.0
  %954 = vmatpush1.msra.mxu0 0.0
  %955 = vmatprep.subr.mxu0 0.0
  %956 = vmatpush1.msra.mxu0 0.0
  %957 = vmatprep.subr.mxu0 0.0
  %958 = vmatpush1.msra.mxu0 0.0
  %959 = vmatprep.subr.mxu0 0.0
  %960 = vmatpush1.msra.mxu0 0.0
  %961 = vmatprep.subr.mxu0 0.0
  %962 = vmatpush1.msra.mxu0 0.0
  %963 = vmatprep.subr.mxu0 0.0
  %964 = vmatpush1.msra.mxu0 0.0
  %965 = vmatprep.subr.mxu0 0.0
  %966 = vmatpush1.msra.mxu0 0.0
  %967 = vmatprep.subr.mxu0 0.0
  %968 = vmatpush1.msra.mxu0 0.0
  %969 = vmatprep.subr.mxu0 0.0
  %970 = vmatpush1.msra.mxu0 0.0
  %971 = vmatprep.subr.mxu0 0.0
  %972 = vmatpush1.msra.mxu0 0.0
  %973 = vmatprep.subr.mxu0 0.0
  %974 = vmatpush1.msra.mxu0 0.0
  %975 = vmatprep.subr.mxu0 0.0
  %976 = vmatpush1.msra.mxu0 0.0
  %977 = vmatprep.subr.mxu0 0.0
  %978 = vmatpush1.msra.mxu0 0.0
  %979 = vmatprep.subr.mxu0 0.0
  %980 = vmatpush1.msra.mxu0 0.0
  %981 = vmatprep.mubr.f32.mxu0 0.0
  %v982 = vand.u32 %v599, 4294901760
  %v983 = vsub.f32 %v599, %v982
  %v984 = vand.u32 %v983, 4294901760
  %985 = vmatmul.mubr.f32.gmra.mrb[0].mxu0 %v984
  %v986 = vpop.f32.mrb[0].mxu0
  %v987 = vadd.f32 %v899, %v986
  %v988 = vpop.f32.mrb[0].mxu0
  %989 = vmatprep.mubr.f32.mxu0 0.0
  %v990 = vand.u32 %v602, 4294901760
  %v991 = vsub.f32 %v602, %v990
  %v992 = vand.u32 %v991, 4294901760
  %993 = vmatmul.mubr.f32.gmra.mrb[0].mxu0 %v992
  %v994 = vpop.f32.mrb[0].mxu0
  %v995 = vadd.f32 %v906, %v994
  %v996 = vpop.f32.mrb[0].mxu0
  %997 = vdwg.mxu0
  %998 = vmatprep.subr.mxu0 0.0
  %v999 = vand.u32 %v582, 4294901760
  %v1000 = vsub.f32 %v582, %v999
  %v1001 = vand.u32 %v1000, 4294901760
  %1002 = vmatpush1.msra.mxu0 %v1001
  %1003 = vmatprep.subr.mxu0 0.0
  %v1004 = vand.u32 %v583, 4294901760
  %v1005 = vsub.f32 %v583, %v1004
  %v1006 = vand.u32 %v1005, 4294901760
  %1007 = vmatpush1.msra.mxu0 %v1006
  %1008 = vmatprep.subr.mxu0 0.0
  %v1009 = vand.u32 %v584, 4294901760
  %v1010 = vsub.f32 %v584, %v1009
  %v1011 = vand.u32 %v1010, 4294901760
  %1012 = vmatpush1.msra.mxu0 %v1011
  %1013 = vmatprep.subr.mxu0 0.0
  %v1014 = vand.u32 %v585, 4294901760
  %v1015 = vsub.f32 %v585, %v1014
  %v1016 = vand.u32 %v1015, 4294901760
  %1017 = vmatpush1.msra.mxu0 %v1016
  %1018 = vmatprep.subr.mxu0 0.0
  %v1019 = vand.u32 %v586, 4294901760
  %v1020 = vsub.f32 %v586, %v1019
  %v1021 = vand.u32 %v1020, 4294901760
  %1022 = vmatpush1.msra.mxu0 %v1021
  %1023 = vmatprep.subr.mxu0 0.0
  %v1024 = vand.u32 %v587, 4294901760
  %v1025 = vsub.f32 %v587, %v1024
  %v1026 = vand.u32 %v1025, 4294901760
  %1027 = vmatpush1.msra.mxu0 %v1026
  %1028 = vmatprep.subr.mxu0 0.0
  %v1029 = vand.u32 %v588, 4294901760
  %v1030 = vsub.f32 %v588, %v1029
  %v1031 = vand.u32 %v1030, 4294901760
  %1032 = vmatpush1.msra.mxu0 %v1031
  %1033 = vmatprep.subr.mxu0 0.0
  %v1034 = vand.u32 %v589, 4294901760
  %v1035 = vsub.f32 %v589, %v1034
  %v1036 = vand.u32 %v1035, 4294901760
  %1037 = vmatpush1.msra.mxu0 %v1036
  %1038 = vmatprep.subr.mxu0 0.0
  %1039 = vmatpush1.msra.mxu0 0.0
  %1040 = vmatprep.subr.mxu0 0.0
  %1041 = vmatpush1.msra.mxu0 0.0
  %1042 = vmatprep.subr.mxu0 0.0
  %1043 = vmatpush1.msra.mxu0 0.0
  %1044 = vmatprep.subr.mxu0 0.0
  %1045 = vmatpush1.msra.mxu0 0.0
  %1046 = vmatprep.subr.mxu0 0.0
  %1047 = vmatpush1.msra.mxu0 0.0
  %1048 = vmatprep.subr.mxu0 0.0
  %1049 = vmatpush1.msra.mxu0 0.0
  %1050 = vmatprep.subr.mxu0 0.0
  %1051 = vmatpush1.msra.mxu0 0.0
  %1052 = vmatprep.subr.mxu0 0.0
  %1053 = vmatpush1.msra.mxu0 0.0
  %1054 = vmatprep.subr.mxu0 0.0
  %1055 = vmatpush1.msra.mxu0 0.0
  %1056 = vmatprep.subr.mxu0 0.0
  %1057 = vmatpush1.msra.mxu0 0.0
  %1058 = vmatprep.subr.mxu0 0.0
  %1059 = vmatpush1.msra.mxu0 0.0
  %1060 = vmatprep.subr.mxu0 0.0
  %1061 = vmatpush1.msra.mxu0 0.0
  %1062 = vmatprep.subr.mxu0 0.0
  %1063 = vmatpush1.msra.mxu0 0.0
  %1064 = vmatprep.subr.mxu0 0.0
  %1065 = vmatpush1.msra.mxu0 0.0
  %1066 = vmatprep.subr.mxu0 0.0
  %1067 = vmatpush1.msra.mxu0 0.0
  %1068 = vmatprep.subr.mxu0 0.0
  %1069 = vmatpush1.msra.mxu0 0.0
  %1070 = vmatprep.subr.mxu0 0.0
  %1071 = vmatpush1.msra.mxu0 0.0
  %1072 = vmatprep.subr.mxu0 0.0
  %1073 = vmatpush1.msra.mxu0 0.0
  %1074 = vmatprep.subr.mxu0 0.0
  %1075 = vmatpush1.msra.mxu0 0.0
  %1076 = vmatprep.subr.mxu0 0.0
  %1077 = vmatpush1.msra.mxu0 0.0
  %1078 = vmatprep.subr.mxu0 0.0
  %1079 = vmatpush1.msra.mxu0 0.0
  %1080 = vmatprep.subr.mxu0 0.0
  %1081 = vmatpush1.msra.mxu0 0.0
  %1082 = vmatprep.subr.mxu0 0.0
  %1083 = vmatpush1.msra.mxu0 0.0
  %1084 = vmatprep.subr.mxu0 0.0
  %1085 = vmatpush1.msra.mxu0 0.0
  %1086 = vmatprep.mubr.f32.mxu0 0.0
  %v1087 = vand.u32 %v599, 4294901760
  %1088 = vmatmul.mubr.f32.gmra.mrb[0].mxu0 %v1087
  %v1089 = vpop.f32.mrb[0].mxu0
  %v1090 = vadd.f32 %v987, %v1089
  %v1091 = vpop.f32.mrb[0].mxu0
  %1092 = vmatprep.mubr.f32.mxu0 0.0
  %v1093 = vand.u32 %v602, 4294901760
  %1094 = vmatmul.mubr.f32.gmra.mrb[0].mxu0 %v1093
  %v1095 = vpop.f32.mrb[0].mxu0
  %v1096 = vadd.f32 %v995, %v1095
  %v1097 = vpop.f32.mrb[0].mxu0
  %1098 = vdwg.mxu0
  %1099 = vmatprep.subr.mxu0 0.0
  %v1100 = vand.u32 %v582, 4294901760
  %1101 = vmatpush1.msra.mxu0 %v1100
  %1102 = vmatprep.subr.mxu0 0.0
  %v1103 = vand.u32 %v583, 4294901760
  %1104 = vmatpush1.msra.mxu0 %v1103
  %1105 = vmatprep.subr.mxu0 0.0
  %v1106 = vand.u32 %v584, 4294901760
  %1107 = vmatpush1.msra.mxu0 %v1106
  %1108 = vmatprep.subr.mxu0 0.0
  %v1109 = vand.u32 %v585, 4294901760
  %1110 = vmatpush1.msra.mxu0 %v1109
  %1111 = vmatprep.subr.mxu0 0.0
  %v1112 = vand.u32 %v586, 4294901760
  %1113 = vmatpush1.msra.mxu0 %v1112
  %1114 = vmatprep.subr.mxu0 0.0
  %v1115 = vand.u32 %v587, 4294901760
  %1116 = vmatpush1.msra.mxu0 %v1115
  %1117 = vmatprep.subr.mxu0 0.0
  %v1118 = vand.u32 %v588, 4294901760
  %1119 = vmatpush1.msra.mxu0 %v1118
  %1120 = vmatprep.subr.mxu0 0.0
  %v1121 = vand.u32 %v589, 4294901760
  %1122 = vmatpush1.msra.mxu0 %v1121
  %1123 = vmatprep.subr.mxu0 0.0
  %1124 = vmatpush1.msra.mxu0 0.0
  %1125 = vmatprep.subr.mxu0 0.0
  %1126 = vmatpush1.msra.mxu0 0.0
  %1127 = vmatprep.subr.mxu0 0.0
  %1128 = vmatpush1.msra.mxu0 0.0
  %1129 = vmatprep.subr.mxu0 0.0
  %1130 = vmatpush1.msra.mxu0 0.0
  %1131 = vmatprep.subr.mxu0 0.0
  %1132 = vmatpush1.msra.mxu0 0.0
  %1133 = vmatprep.subr.mxu0 0.0
  %1134 = vmatpush1.msra.mxu0 0.0
  %1135 = vmatprep.subr.mxu0 0.0
  %1136 = vmatpush1.msra.mxu0 0.0
  %1137 = vmatprep.subr.mxu0 0.0
  %1138 = vmatpush1.msra.mxu0 0.0
  %1139 = vmatprep.subr.mxu0 0.0
  %1140 = vmatpush1.msra.mxu0 0.0
  %1141 = vmatprep.subr.mxu0 0.0
  %1142 = vmatpush1.msra.mxu0 0.0
  %1143 = vmatprep.subr.mxu0 0.0
  %1144 = vmatpush1.msra.mxu0 0.0
  %1145 = vmatprep.subr.mxu0 0.0
  %1146 = vmatpush1.msra.mxu0 0.0
  %1147 = vmatprep.subr.mxu0 0.0
  %1148 = vmatpush1.msra.mxu0 0.0
  %1149 = vmatprep.subr.mxu0 0.0
  %1150 = vmatpush1.msra.mxu0 0.0
  %1151 = vmatprep.subr.mxu0 0.0
  %1152 = vmatpush1.msra.mxu0 0.0
  %1153 = vmatprep.subr.mxu0 0.0
  %1154 = vmatpush1.msra.mxu0 0.0
  %1155 = vmatprep.subr.mxu0 0.0
  %1156 = vmatpush1.msra.mxu0 0.0
  %1157 = vmatprep.subr.mxu0 0.0
  %1158 = vmatpush1.msra.mxu0 0.0
  %1159 = vmatprep.subr.mxu0 0.0
  %1160 = vmatpush1.msra.mxu0 0.0
  %1161 = vmatprep.subr.mxu0 0.0
  %1162 = vmatpush1.msra.mxu0 0.0
  %1163 = vmatprep.subr.mxu0 0.0
  %1164 = vmatpush1.msra.mxu0 0.0
  %1165 = vmatprep.subr.mxu0 0.0
  %1166 = vmatpush1.msra.mxu0 0.0
  %1167 = vmatprep.subr.mxu0 0.0
  %1168 = vmatpush1.msra.mxu0 0.0
  %1169 = vmatprep.subr.mxu0 0.0
  %1170 = vmatpush1.msra.mxu0 0.0
  %1171 = vmatprep.mubr.f32.mxu0 0.0
  %v1172 = vand.u32 %v599, 4294901760
  %1173 = vmatmul.mubr.f32.gmra.mrb[0].mxu0 %v1172
  %v1174 = vpop.f32.mrb[0].mxu0
  %v1175 = vadd.f32 %v1090, %v1174
  %v1176 = vpop.f32.mrb[0].mxu0
  %1177 = vmatprep.mubr.f32.mxu0 0.0
  %v1178 = vand.u32 %v602, 4294901760
  %1179 = vmatmul.mubr.f32.gmra.mrb[0].mxu0 %v1178
  %v1180 = vpop.f32.mrb[0].mxu0
  %v1181 = vadd.f32 %v1096, %v1180
  %v1182 = vpop.f32.mrb[0].mxu0
  %1183 = vdwg.mxu0
  %v1184 = vmax.f32 %v1175, 0.0
  %v1185 = vmax.f32 %v1181, 0.0
  %v1186 = vld [vmem:[%s5] sm:$0xff]
  %v1187 = vld [vmem:[%s5 + $0x8] sm:$0xff]
  %v1188 = vld [vmem:[%s5 + $0x10] sm:$0xff]
  %v1189 = vld [vmem:[%s5 + $0x18] sm:$0xff]
  %v1190 = vld [vmem:[%s6] sm:$0x1]
  %v1192 = vlaneseq
  %v1193 = vshrl.u32 %v1192, 7
  %v1194 = vsub.s32 0, %v1193
  %v1195 = vrot.slane %v1190, %v1194
  %v1198 = vsel %vm45, %v1184, 0
  %v1201 = vsel %vm45, %v1185, 0
  %1203 = vmatprep.subr.mxu0 0.0
  %v1204 = vand.u32 %v1186, 4294901760
  %1205 = vmatpush1.msra.mxu0 %v1204
  %1206 = vmatprep.subr.mxu0 0.0
  %v1207 = vand.u32 %v1187, 4294901760
  %1208 = vmatpush1.msra.mxu0 %v1207
  %1209 = vmatprep.subr.mxu0 0.0
  %v1210 = vand.u32 %v1188, 4294901760
  %1211 = vmatpush1.msra.mxu0 %v1210
  %1212 = vmatprep.subr.mxu0 0.0
  %v1213 = vand.u32 %v1189, 4294901760
  %1214 = vmatpush1.msra.mxu0 %v1213
  %1215 = vmatprep.subr.mxu0 0.0
  %1216 = vmatpush1.msra.mxu0 0.0
  %1217 = vmatprep.subr.mxu0 0.0
  %1218 = vmatpush1.msra.mxu0 0.0
  %1219 = vmatprep.subr.mxu0 0.0
  %1220 = vmatpush1.msra.mxu0 0.0
  %1221 = vmatprep.subr.mxu0 0.0
  %1222 = vmatpush1.msra.mxu0 0.0
  %1223 = vmatprep.subr.mxu0 0.0
  %1224 = vmatpush1.msra.mxu0 0.0
  %1225 = vmatprep.subr.mxu0 0.0
  %1226 = vmatpush1.msra.mxu0 0.0
  %1227 = vmatprep.subr.mxu0 0.0
  %1228 = vmatpush1.msra.mxu0 0.0
  %1229 = vmatprep.subr.mxu0 0.0
  %1230 = vmatpush1.msra.mxu0 0.0
  %1231 = vmatprep.subr.mxu0 0.0
  %1232 = vmatpush1.msra.mxu0 0.0
  %1233 = vmatprep.subr.mxu0 0.0
  %1234 = vmatpush1.msra.mxu0 0.0
  %1235 = vmatprep.subr.mxu0 0.0
  %1236 = vmatpush1.msra.mxu0 0.0
  %1237 = vmatprep.subr.mxu0 0.0
  %1238 = vmatpush1.msra.mxu0 0.0
  %1239 = vmatprep.subr.mxu0 0.0
  %1240 = vmatpush1.msra.mxu0 0.0
  %1241 = vmatprep.subr.mxu0 0.0
  %1242 = vmatpush1.msra.mxu0 0.0
  %1243 = vmatprep.subr.mxu0 0.0
  %1244 = vmatpush1.msra.mxu0 0.0
  %1245 = vmatprep.subr.mxu0 0.0
  %1246 = vmatpush1.msra.mxu0 0.0
  %1247 = vmatprep.subr.mxu0 0.0
  %1248 = vmatpush1.msra.mxu0 0.0
  %1249 = vmatprep.subr.mxu0 0.0
  %1250 = vmatpush1.msra.mxu0 0.0
  %1251 = vmatprep.subr.mxu0 0.0
  %1252 = vmatpush1.msra.mxu0 0.0
  %1253 = vmatprep.subr.mxu0 0.0
  %1254 = vmatpush1.msra.mxu0 0.0
  %1255 = vmatprep.subr.mxu0 0.0
  %1256 = vmatpush1.msra.mxu0 0.0
  %1257 = vmatprep.subr.mxu0 0.0
  %1258 = vmatpush1.msra.mxu0 0.0
  %1259 = vmatprep.subr.mxu0 0.0
  %1260 = vmatpush1.msra.mxu0 0.0
  %1261 = vmatprep.subr.mxu0 0.0
  %1262 = vmatpush1.msra.mxu0 0.0
  %1263 = vmatprep.subr.mxu0 0.0
  %1264 = vmatpush1.msra.mxu0 0.0
  %1265 = vmatprep.subr.mxu0 0.0
  %1266 = vmatpush1.msra.mxu0 0.0
  %1267 = vmatprep.subr.mxu0 0.0
  %1268 = vmatpush1.msra.mxu0 0.0
  %1269 = vmatprep.subr.mxu0 0.0
  %1270 = vmatpush1.msra.mxu0 0.0
  %1271 = vmatprep.mubr.f32.mxu0 0.0
  %v1272 = vand.u32 %v1198, 4294901760
  %v1273 = vsub.f32 %v1198, %v1272
  %v1274 = vand.u32 %v1273, 4294901760
  %v1275 = vsub.f32 %v1273, %v1274
  %v1276 = vand.u32 %v1275, 4294901760
  %1277 = vmatmul.mubr.f32.gmra.mrb[0].mxu0 %v1276
  %v1278 = vpop.f32.mrb[0].mxu0
  %v1279 = vadd.f32 %v1195, %v1278
  %v1280 = vpop.f32.mrb[0].mxu0
  %1281 = vmatprep.mubr.f32.mxu0 0.0
  %v1282 = vand.u32 %v1201, 4294901760
  %v1283 = vsub.f32 %v1201, %v1282
  %v1284 = vand.u32 %v1283, 4294901760
  %v1285 = vsub.f32 %v1283, %v1284
  %v1286 = vand.u32 %v1285, 4294901760
  %1287 = vmatmul.mubr.f32.gmra.mrb[0].mxu0 %v1286
  %v1288 = vpop.f32.mrb[0].mxu0
  %v1289 = vadd.f32 %v1195, %v1288
  %v1290 = vpop.f32.mrb[0].mxu0
  %1291 = vdwg.mxu0
  %1292 = vmatprep.subr.mxu0 0.0
  %v1293 = vand.u32 %v1186, 4294901760
  %v1294 = vsub.f32 %v1186, %v1293
  %v1295 = vand.u32 %v1294, 4294901760
  %v1296 = vsub.f32 %v1294, %v1295
  %v1297 = vand.u32 %v1296, 4294901760
  %1298 = vmatpush1.msra.mxu0 %v1297
  %1299 = vmatprep.subr.mxu0 0.0
  %v1300 = vand.u32 %v1187, 4294901760
  %v1301 = vsub.f32 %v1187, %v1300
  %v1302 = vand.u32 %v1301, 4294901760
  %v1303 = vsub.f32 %v1301, %v1302
  %v1304 = vand.u32 %v1303, 4294901760
  %1305 = vmatpush1.msra.mxu0 %v1304
  %1306 = vmatprep.subr.mxu0 0.0
  %v1307 = vand.u32 %v1188, 4294901760
  %v1308 = vsub.f32 %v1188, %v1307
  %v1309 = vand.u32 %v1308, 4294901760
  %v1310 = vsub.f32 %v1308, %v1309
  %v1311 = vand.u32 %v1310, 4294901760
  %1312 = vmatpush1.msra.mxu0 %v1311
  %1313 = vmatprep.subr.mxu0 0.0
  %v1314 = vand.u32 %v1189, 4294901760
  %v1315 = vsub.f32 %v1189, %v1314
  %v1316 = vand.u32 %v1315, 4294901760
  %v1317 = vsub.f32 %v1315, %v1316
  %v1318 = vand.u32 %v1317, 4294901760
  %1319 = vmatpush1.msra.mxu0 %v1318
  %1320 = vmatprep.subr.mxu0 0.0
  %1321 = vmatpush1.msra.mxu0 0.0
  %1322 = vmatprep.subr.mxu0 0.0
  %1323 = vmatpush1.msra.mxu0 0.0
  %1324 = vmatprep.subr.mxu0 0.0
  %1325 = vmatpush1.msra.mxu0 0.0
  %1326 = vmatprep.subr.mxu0 0.0
  %1327 = vmatpush1.msra.mxu0 0.0
  %1328 = vmatprep.subr.mxu0 0.0
  %1329 = vmatpush1.msra.mxu0 0.0
  %1330 = vmatprep.subr.mxu0 0.0
  %1331 = vmatpush1.msra.mxu0 0.0
  %1332 = vmatprep.subr.mxu0 0.0
  %1333 = vmatpush1.msra.mxu0 0.0
  %1334 = vmatprep.subr.mxu0 0.0
  %1335 = vmatpush1.msra.mxu0 0.0
  %1336 = vmatprep.subr.mxu0 0.0
  %1337 = vmatpush1.msra.mxu0 0.0
  %1338 = vmatprep.subr.mxu0 0.0
  %1339 = vmatpush1.msra.mxu0 0.0
  %1340 = vmatprep.subr.mxu0 0.0
  %1341 = vmatpush1.msra.mxu0 0.0
  %1342 = vmatprep.subr.mxu0 0.0
  %1343 = vmatpush1.msra.mxu0 0.0
  %1344 = vmatprep.subr.mxu0 0.0
  %1345 = vmatpush1.msra.mxu0 0.0
  %1346 = vmatprep.subr.mxu0 0.0
  %1347 = vmatpush1.msra.mxu0 0.0
  %1348 = vmatprep.subr.mxu0 0.0
  %1349 = vmatpush1.msra.mxu0 0.0
  %1350 = vmatprep.subr.mxu0 0.0
  %1351 = vmatpush1.msra.mxu0 0.0
  %1352 = vmatprep.subr.mxu0 0.0
  %1353 = vmatpush1.msra.mxu0 0.0
  %1354 = vmatprep.subr.mxu0 0.0
  %1355 = vmatpush1.msra.mxu0 0.0
  %1356 = vmatprep.subr.mxu0 0.0
  %1357 = vmatpush1.msra.mxu0 0.0
  %1358 = vmatprep.subr.mxu0 0.0
  %1359 = vmatpush1.msra.mxu0 0.0
  %1360 = vmatprep.subr.mxu0 0.0
  %1361 = vmatpush1.msra.mxu0 0.0
  %1362 = vmatprep.subr.mxu0 0.0
  %1363 = vmatpush1.msra.mxu0 0.0
  %1364 = vmatprep.subr.mxu0 0.0
  %1365 = vmatpush1.msra.mxu0 0.0
  %1366 = vmatprep.subr.mxu0 0.0
  %1367 = vmatpush1.msra.mxu0 0.0
  %1368 = vmatprep.subr.mxu0 0.0
  %1369 = vmatpush1.msra.mxu0 0.0
  %1370 = vmatprep.subr.mxu0 0.0
  %1371 = vmatpush1.msra.mxu0 0.0
  %1372 = vmatprep.subr.mxu0 0.0
  %1373 = vmatpush1.msra.mxu0 0.0
  %1374 = vmatprep.subr.mxu0 0.0
  %1375 = vmatpush1.msra.mxu0 0.0
  %1376 = vmatprep.mubr.f32.mxu0 0.0
  %v1377 = vand.u32 %v1198, 4294901760
  %1378 = vmatmul.mubr.f32.gmra.mrb[0].mxu0 %v1377
  %v1379 = vpop.f32.mrb[0].mxu0
  %v1380 = vadd.f32 %v1279, %v1379
  %v1381 = vpop.f32.mrb[0].mxu0
  %1382 = vmatprep.mubr.f32.mxu0 0.0
  %v1383 = vand.u32 %v1201, 4294901760
  %1384 = vmatmul.mubr.f32.gmra.mrb[0].mxu0 %v1383
  %v1385 = vpop.f32.mrb[0].mxu0
  %v1386 = vadd.f32 %v1289, %v1385
  %v1387 = vpop.f32.mrb[0].mxu0
  %1388 = vdwg.mxu0
  %1389 = vmatprep.subr.mxu0 0.0
  %v1390 = vand.u32 %v1186, 4294901760
  %v1391 = vsub.f32 %v1186, %v1390
  %1392 = vmatpush1.msra.mxu0 %v1391
  %1393 = vmatprep.subr.mxu0 0.0
  %v1394 = vand.u32 %v1187, 4294901760
  %v1395 = vsub.f32 %v1187, %v1394
  %1396 = vmatpush1.msra.mxu0 %v1395
  %1397 = vmatprep.subr.mxu0 0.0
  %v1398 = vand.u32 %v1188, 4294901760
  %v1399 = vsub.f32 %v1188, %v1398
  %1400 = vmatpush1.msra.mxu0 %v1399
  %1401 = vmatprep.subr.mxu0 0.0
  %v1402 = vand.u32 %v1189, 4294901760
  %v1403 = vsub.f32 %v1189, %v1402
  %1404 = vmatpush1.msra.mxu0 %v1403
  %1405 = vmatprep.subr.mxu0 0.0
  %1406 = vmatpush1.msra.mxu0 0.0
  %1407 = vmatprep.subr.mxu0 0.0
  %1408 = vmatpush1.msra.mxu0 0.0
  %1409 = vmatprep.subr.mxu0 0.0
  %1410 = vmatpush1.msra.mxu0 0.0
  %1411 = vmatprep.subr.mxu0 0.0
  %1412 = vmatpush1.msra.mxu0 0.0
  %1413 = vmatprep.subr.mxu0 0.0
  %1414 = vmatpush1.msra.mxu0 0.0
  %1415 = vmatprep.subr.mxu0 0.0
  %1416 = vmatpush1.msra.mxu0 0.0
  %1417 = vmatprep.subr.mxu0 0.0
  %1418 = vmatpush1.msra.mxu0 0.0
  %1419 = vmatprep.subr.mxu0 0.0
  %1420 = vmatpush1.msra.mxu0 0.0
  %1421 = vmatprep.subr.mxu0 0.0
  %1422 = vmatpush1.msra.mxu0 0.0
  %1423 = vmatprep.subr.mxu0 0.0
  %1424 = vmatpush1.msra.mxu0 0.0
  %1425 = vmatprep.subr.mxu0 0.0
  %1426 = vmatpush1.msra.mxu0 0.0
  %1427 = vmatprep.subr.mxu0 0.0
  %1428 = vmatpush1.msra.mxu0 0.0
  %1429 = vmatprep.subr.mxu0 0.0
  %1430 = vmatpush1.msra.mxu0 0.0
  %1431 = vmatprep.subr.mxu0 0.0
  %1432 = vmatpush1.msra.mxu0 0.0
  %1433 = vmatprep.subr.mxu0 0.0
  %1434 = vmatpush1.msra.mxu0 0.0
  %1435 = vmatprep.subr.mxu0 0.0
  %1436 = vmatpush1.msra.mxu0 0.0
  %1437 = vmatprep.subr.mxu0 0.0
  %1438 = vmatpush1.msra.mxu0 0.0
  %1439 = vmatprep.subr.mxu0 0.0
  %1440 = vmatpush1.msra.mxu0 0.0
  %1441 = vmatprep.subr.mxu0 0.0
  %1442 = vmatpush1.msra.mxu0 0.0
  %1443 = vmatprep.subr.mxu0 0.0
  %1444 = vmatpush1.msra.mxu0 0.0
  %1445 = vmatprep.subr.mxu0 0.0
  %1446 = vmatpush1.msra.mxu0 0.0
  %1447 = vmatprep.subr.mxu0 0.0
  %1448 = vmatpush1.msra.mxu0 0.0
  %1449 = vmatprep.subr.mxu0 0.0
  %1450 = vmatpush1.msra.mxu0 0.0
  %1451 = vmatprep.subr.mxu0 0.0
  %1452 = vmatpush1.msra.mxu0 0.0
  %1453 = vmatprep.subr.mxu0 0.0
  %1454 = vmatpush1.msra.mxu0 0.0
  %1455 = vmatprep.subr.mxu0 0.0
  %1456 = vmatpush1.msra.mxu0 0.0
  %1457 = vmatprep.subr.mxu0 0.0
  %1458 = vmatpush1.msra.mxu0 0.0
  %1459 = vmatprep.subr.mxu0 0.0
  %1460 = vmatpush1.msra.mxu0 0.0
  %1461 = vmatprep.mubr.f32.mxu0 0.0
  %v1462 = vand.u32 %v1198, 4294901760
  %v1463 = vsub.f32 %v1198, %v1462
  %1464 = vmatmul.mubr.f32.gmra.mrb[0].mxu0 %v1463
  %v1465 = vpop.f32.mrb[0].mxu0
  %v1466 = vadd.f32 %v1380, %v1465
  %v1467 = vpop.f32.mrb[0].mxu0
  %1468 = vmatprep.mubr.f32.mxu0 0.0
  %v1469 = vand.u32 %v1201, 4294901760
  %v1470 = vsub.f32 %v1201, %v1469
  %1471 = vmatmul.mubr.f32.gmra.mrb[0].mxu0 %v1470
  %v1472 = vpop.f32.mrb[0].mxu0
  %v1473 = vadd.f32 %v1386, %v1472
  %v1474 = vpop.f32.mrb[0].mxu0
  %1475 = vdwg.mxu0
  %1476 = vmatprep.subr.mxu0 0.0
  %v1477 = vand.u32 %v1186, 4294901760
  %1478 = vmatpush1.msra.mxu0 %v1477
  %1479 = vmatprep.subr.mxu0 0.0
  %v1480 = vand.u32 %v1187, 4294901760
  %1481 = vmatpush1.msra.mxu0 %v1480
  %1482 = vmatprep.subr.mxu0 0.0
  %v1483 = vand.u32 %v1188, 4294901760
  %1484 = vmatpush1.msra.mxu0 %v1483
  %1485 = vmatprep.subr.mxu0 0.0
  %v1486 = vand.u32 %v1189, 4294901760
  %1487 = vmatpush1.msra.mxu0 %v1486
  %1488 = vmatprep.subr.mxu0 0.0
  %1489 = vmatpush1.msra.mxu0 0.0
  %1490 = vmatprep.subr.mxu0 0.0
  %1491 = vmatpush1.msra.mxu0 0.0
  %1492 = vmatprep.subr.mxu0 0.0
  %1493 = vmatpush1.msra.mxu0 0.0
  %1494 = vmatprep.subr.mxu0 0.0
  %1495 = vmatpush1.msra.mxu0 0.0
  %1496 = vmatprep.subr.mxu0 0.0
  %1497 = vmatpush1.msra.mxu0 0.0
  %1498 = vmatprep.subr.mxu0 0.0
  %1499 = vmatpush1.msra.mxu0 0.0
  %1500 = vmatprep.subr.mxu0 0.0
  %1501 = vmatpush1.msra.mxu0 0.0
  %1502 = vmatprep.subr.mxu0 0.0
  %1503 = vmatpush1.msra.mxu0 0.0
  %1504 = vmatprep.subr.mxu0 0.0
  %1505 = vmatpush1.msra.mxu0 0.0
  %1506 = vmatprep.subr.mxu0 0.0
  %1507 = vmatpush1.msra.mxu0 0.0
  %1508 = vmatprep.subr.mxu0 0.0
  %1509 = vmatpush1.msra.mxu0 0.0
  %1510 = vmatprep.subr.mxu0 0.0
  %1511 = vmatpush1.msra.mxu0 0.0
  %1512 = vmatprep.subr.mxu0 0.0
  %1513 = vmatpush1.msra.mxu0 0.0
  %1514 = vmatprep.subr.mxu0 0.0
  %1515 = vmatpush1.msra.mxu0 0.0
  %1516 = vmatprep.subr.mxu0 0.0
  %1517 = vmatpush1.msra.mxu0 0.0
  %1518 = vmatprep.subr.mxu0 0.0
  %1519 = vmatpush1.msra.mxu0 0.0
  %1520 = vmatprep.subr.mxu0 0.0
  %1521 = vmatpush1.msra.mxu0 0.0
  %1522 = vmatprep.subr.mxu0 0.0
  %1523 = vmatpush1.msra.mxu0 0.0
  %1524 = vmatprep.subr.mxu0 0.0
  %1525 = vmatpush1.msra.mxu0 0.0
  %1526 = vmatprep.subr.mxu0 0.0
  %1527 = vmatpush1.msra.mxu0 0.0
  %1528 = vmatprep.subr.mxu0 0.0
  %1529 = vmatpush1.msra.mxu0 0.0
  %1530 = vmatprep.subr.mxu0 0.0
  %1531 = vmatpush1.msra.mxu0 0.0
  %1532 = vmatprep.subr.mxu0 0.0
  %1533 = vmatpush1.msra.mxu0 0.0
  %1534 = vmatprep.subr.mxu0 0.0
  %1535 = vmatpush1.msra.mxu0 0.0
  %1536 = vmatprep.subr.mxu0 0.0
  %1537 = vmatpush1.msra.mxu0 0.0
  %1538 = vmatprep.subr.mxu0 0.0
  %1539 = vmatpush1.msra.mxu0 0.0
  %1540 = vmatprep.subr.mxu0 0.0
  %1541 = vmatpush1.msra.mxu0 0.0
  %1542 = vmatprep.subr.mxu0 0.0
  %1543 = vmatpush1.msra.mxu0 0.0
  %1544 = vmatprep.mubr.f32.mxu0 0.0
  %v1545 = vand.u32 %v1198, 4294901760
  %v1546 = vsub.f32 %v1198, %v1545
  %v1547 = vand.u32 %v1546, 4294901760
  %1548 = vmatmul.mubr.f32.gmra.mrb[0].mxu0 %v1547
  %v1549 = vpop.f32.mrb[0].mxu0
  %v1550 = vadd.f32 %v1466, %v1549
  %v1551 = vpop.f32.mrb[0].mxu0
  %1552 = vmatprep.mubr.f32.mxu0 0.0
  %v1553 = vand.u32 %v1201, 4294901760
  %v1554 = vsub.f32 %v1201, %v1553
  %v1555 = vand.u32 %v1554, 4294901760
  %1556 = vmatmul.mubr.f32.gmra.mrb[0].mxu0 %v1555
  %v1557 = vpop.f32.mrb[0].mxu0
  %v1558 = vadd.f32 %v1473, %v1557
  %v1559 = vpop.f32.mrb[0].mxu0
  %1560 = vdwg.mxu0
  %1561 = vmatprep.subr.mxu0 0.0
  %v1562 = vand.u32 %v1186, 4294901760
  %v1563 = vsub.f32 %v1186, %v1562
  %v1564 = vand.u32 %v1563, 4294901760
  %1565 = vmatpush1.msra.mxu0 %v1564
  %1566 = vmatprep.subr.mxu0 0.0
  %v1567 = vand.u32 %v1187, 4294901760
  %v1568 = vsub.f32 %v1187, %v1567
  %v1569 = vand.u32 %v1568, 4294901760
  %1570 = vmatpush1.msra.mxu0 %v1569
  %1571 = vmatprep.subr.mxu0 0.0
  %v1572 = vand.u32 %v1188, 4294901760
  %v1573 = vsub.f32 %v1188, %v1572
  %v1574 = vand.u32 %v1573, 4294901760
  %1575 = vmatpush1.msra.mxu0 %v1574
  %1576 = vmatprep.subr.mxu0 0.0
  %v1577 = vand.u32 %v1189, 4294901760
  %v1578 = vsub.f32 %v1189, %v1577
  %v1579 = vand.u32 %v1578, 4294901760
  %1580 = vmatpush1.msra.mxu0 %v1579
  %1581 = vmatprep.subr.mxu0 0.0
  %1582 = vmatpush1.msra.mxu0 0.0
  %1583 = vmatprep.subr.mxu0 0.0
  %1584 = vmatpush1.msra.mxu0 0.0
  %1585 = vmatprep.subr.mxu0 0.0
  %1586 = vmatpush1.msra.mxu0 0.0
  %1587 = vmatprep.subr.mxu0 0.0
  %1588 = vmatpush1.msra.mxu0 0.0
  %1589 = vmatprep.subr.mxu0 0.0
  %1590 = vmatpush1.msra.mxu0 0.0
  %1591 = vmatprep.subr.mxu0 0.0
  %1592 = vmatpush1.msra.mxu0 0.0
  %1593 = vmatprep.subr.mxu0 0.0
  %1594 = vmatpush1.msra.mxu0 0.0
  %1595 = vmatprep.subr.mxu0 0.0
  %1596 = vmatpush1.msra.mxu0 0.0
  %1597 = vmatprep.subr.mxu0 0.0
  %1598 = vmatpush1.msra.mxu0 0.0
  %1599 = vmatprep.subr.mxu0 0.0
  %1600 = vmatpush1.msra.mxu0 0.0
  %1601 = vmatprep.subr.mxu0 0.0
  %1602 = vmatpush1.msra.mxu0 0.0
  %1603 = vmatprep.subr.mxu0 0.0
  %1604 = vmatpush1.msra.mxu0 0.0
  %1605 = vmatprep.subr.mxu0 0.0
  %1606 = vmatpush1.msra.mxu0 0.0
  %1607 = vmatprep.subr.mxu0 0.0
  %1608 = vmatpush1.msra.mxu0 0.0
  %1609 = vmatprep.subr.mxu0 0.0
  %1610 = vmatpush1.msra.mxu0 0.0
  %1611 = vmatprep.subr.mxu0 0.0
  %1612 = vmatpush1.msra.mxu0 0.0
  %1613 = vmatprep.subr.mxu0 0.0
  %1614 = vmatpush1.msra.mxu0 0.0
  %1615 = vmatprep.subr.mxu0 0.0
  %1616 = vmatpush1.msra.mxu0 0.0
  %1617 = vmatprep.subr.mxu0 0.0
  %1618 = vmatpush1.msra.mxu0 0.0
  %1619 = vmatprep.subr.mxu0 0.0
  %1620 = vmatpush1.msra.mxu0 0.0
  %1621 = vmatprep.subr.mxu0 0.0
  %1622 = vmatpush1.msra.mxu0 0.0
  %1623 = vmatprep.subr.mxu0 0.0
  %1624 = vmatpush1.msra.mxu0 0.0
  %1625 = vmatprep.subr.mxu0 0.0
  %1626 = vmatpush1.msra.mxu0 0.0
  %1627 = vmatprep.subr.mxu0 0.0
  %1628 = vmatpush1.msra.mxu0 0.0
  %1629 = vmatprep.subr.mxu0 0.0
  %1630 = vmatpush1.msra.mxu0 0.0
  %1631 = vmatprep.subr.mxu0 0.0
  %1632 = vmatpush1.msra.mxu0 0.0
  %1633 = vmatprep.subr.mxu0 0.0
  %1634 = vmatpush1.msra.mxu0 0.0
  %1635 = vmatprep.subr.mxu0 0.0
  %1636 = vmatpush1.msra.mxu0 0.0
  %1637 = vmatprep.mubr.f32.mxu0 0.0
  %v1638 = vand.u32 %v1198, 4294901760
  %1639 = vmatmul.mubr.f32.gmra.mrb[0].mxu0 %v1638
  %v1640 = vpop.f32.mrb[0].mxu0
  %v1641 = vadd.f32 %v1550, %v1640
  %v1642 = vpop.f32.mrb[0].mxu0
  %1643 = vmatprep.mubr.f32.mxu0 0.0
  %v1644 = vand.u32 %v1201, 4294901760
  %1645 = vmatmul.mubr.f32.gmra.mrb[0].mxu0 %v1644
  %v1646 = vpop.f32.mrb[0].mxu0
  %v1647 = vadd.f32 %v1558, %v1646
  %v1648 = vpop.f32.mrb[0].mxu0
  %1649 = vdwg.mxu0
  %1650 = vmatprep.subr.mxu0 0.0
  %v1651 = vand.u32 %v1186, 4294901760
  %1652 = vmatpush1.msra.mxu0 %v1651
  %1653 = vmatprep.subr.mxu0 0.0
  %v1654 = vand.u32 %v1187, 4294901760
  %1655 = vmatpush1.msra.mxu0 %v1654
  %1656 = vmatprep.subr.mxu0 0.0
  %v1657 = vand.u32 %v1188, 4294901760
  %1658 = vmatpush1.msra.mxu0 %v1657
  %1659 = vmatprep.subr.mxu0 0.0
  %v1660 = vand.u32 %v1189, 4294901760
  %1661 = vmatpush1.msra.mxu0 %v1660
  %1662 = vmatprep.subr.mxu0 0.0
  %1663 = vmatpush1.msra.mxu0 0.0
  %1664 = vmatprep.subr.mxu0 0.0
  %1665 = vmatpush1.msra.mxu0 0.0
  %1666 = vmatprep.subr.mxu0 0.0
  %1667 = vmatpush1.msra.mxu0 0.0
  %1668 = vmatprep.subr.mxu0 0.0
  %1669 = vmatpush1.msra.mxu0 0.0
  %1670 = vmatprep.subr.mxu0 0.0
  %1671 = vmatpush1.msra.mxu0 0.0
  %1672 = vmatprep.subr.mxu0 0.0
  %1673 = vmatpush1.msra.mxu0 0.0
  %1674 = vmatprep.subr.mxu0 0.0
  %1675 = vmatpush1.msra.mxu0 0.0
  %1676 = vmatprep.subr.mxu0 0.0
  %1677 = vmatpush1.msra.mxu0 0.0
  %1678 = vmatprep.subr.mxu0 0.0
  %1679 = vmatpush1.msra.mxu0 0.0
  %1680 = vmatprep.subr.mxu0 0.0
  %1681 = vmatpush1.msra.mxu0 0.0
  %1682 = vmatprep.subr.mxu0 0.0
  %1683 = vmatpush1.msra.mxu0 0.0
  %1684 = vmatprep.subr.mxu0 0.0
  %1685 = vmatpush1.msra.mxu0 0.0
  %1686 = vmatprep.subr.mxu0 0.0
  %1687 = vmatpush1.msra.mxu0 0.0
  %1688 = vmatprep.subr.mxu0 0.0
  %1689 = vmatpush1.msra.mxu0 0.0
  %1690 = vmatprep.subr.mxu0 0.0
  %1691 = vmatpush1.msra.mxu0 0.0
  %1692 = vmatprep.subr.mxu0 0.0
  %1693 = vmatpush1.msra.mxu0 0.0
  %1694 = vmatprep.subr.mxu0 0.0
  %1695 = vmatpush1.msra.mxu0 0.0
  %1696 = vmatprep.subr.mxu0 0.0
  %1697 = vmatpush1.msra.mxu0 0.0
  %1698 = vmatprep.subr.mxu0 0.0
  %1699 = vmatpush1.msra.mxu0 0.0
  %1700 = vmatprep.subr.mxu0 0.0
  %1701 = vmatpush1.msra.mxu0 0.0
  %1702 = vmatprep.subr.mxu0 0.0
  %1703 = vmatpush1.msra.mxu0 0.0
  %1704 = vmatprep.subr.mxu0 0.0
  %1705 = vmatpush1.msra.mxu0 0.0
  %1706 = vmatprep.subr.mxu0 0.0
  %1707 = vmatpush1.msra.mxu0 0.0
  %1708 = vmatprep.subr.mxu0 0.0
  %1709 = vmatpush1.msra.mxu0 0.0
  %1710 = vmatprep.subr.mxu0 0.0
  %1711 = vmatpush1.msra.mxu0 0.0
  %1712 = vmatprep.subr.mxu0 0.0
  %1713 = vmatpush1.msra.mxu0 0.0
  %1714 = vmatprep.subr.mxu0 0.0
  %1715 = vmatpush1.msra.mxu0 0.0
  %1716 = vmatprep.subr.mxu0 0.0
  %1717 = vmatpush1.msra.mxu0 0.0
  %1718 = vmatprep.mubr.f32.mxu0 0.0
  %v1719 = vand.u32 %v1198, 4294901760
  %1720 = vmatmul.mubr.f32.gmra.mrb[0].mxu0 %v1719
  %v1721 = vpop.f32.mrb[0].mxu0
  %v1722 = vadd.f32 %v1641, %v1721
  %v1723 = vpop.f32.mrb[0].mxu0
  %1724 = vmatprep.mubr.f32.mxu0 0.0
  %v1725 = vand.u32 %v1201, 4294901760
  %1726 = vmatmul.mubr.f32.gmra.mrb[0].mxu0 %v1725
  %v1727 = vpop.f32.mrb[0].mxu0
  %v1728 = vadd.f32 %v1647, %v1727
  %v1729 = vpop.f32.mrb[0].mxu0
  %1730 = vdwg.mxu0
  %v1731 = vmax.f32 %v1722, 0.0
  %v1732 = vmax.f32 %v1728, 0.0
  %v1733 = vld [vmem:[%s7] sm:$0xff]
  %v1734 = vld [vmem:[%s7 + $0x8] sm:$0xff]
  %v1735 = vld [vmem:[%s8] sm:$0x1]
  %v1737 = vlaneseq
  %v1738 = vshrl.u32 %v1737, 7
  %v1739 = vsub.s32 0, %v1738
  %v1740 = vrot.slane %v1735, %v1739
  %vm1742 = vcmask 130048
  %v1744 = vsel %vm1742, %v1731, 0
  %v1747 = vsel %vm1742, %v1732, 0
  %1749 = vmatprep.subr.mxu0 0.0
  %v1750 = vand.u32 %v1733, 4294901760
  %1751 = vmatpush1.msra.mxu0 %v1750
  %1752 = vmatprep.subr.mxu0 0.0
  %v1753 = vand.u32 %v1734, 4294901760
  %1754 = vmatpush1.msra.mxu0 %v1753
  %1755 = vmatprep.subr.mxu0 0.0
  %1756 = vmatpush1.msra.mxu0 0.0
  %1757 = vmatprep.subr.mxu0 0.0
  %1758 = vmatpush1.msra.mxu0 0.0
  %1759 = vmatprep.subr.mxu0 0.0
  %1760 = vmatpush1.msra.mxu0 0.0
  %1761 = vmatprep.subr.mxu0 0.0
  %1762 = vmatpush1.msra.mxu0 0.0
  %1763 = vmatprep.subr.mxu0 0.0
  %1764 = vmatpush1.msra.mxu0 0.0
  %1765 = vmatprep.subr.mxu0 0.0
  %1766 = vmatpush1.msra.mxu0 0.0
  %1767 = vmatprep.subr.mxu0 0.0
  %1768 = vmatpush1.msra.mxu0 0.0
  %1769 = vmatprep.subr.mxu0 0.0
  %1770 = vmatpush1.msra.mxu0 0.0
  %1771 = vmatprep.subr.mxu0 0.0
  %1772 = vmatpush1.msra.mxu0 0.0
  %1773 = vmatprep.subr.mxu0 0.0
  %1774 = vmatpush1.msra.mxu0 0.0
  %1775 = vmatprep.subr.mxu0 0.0
  %1776 = vmatpush1.msra.mxu0 0.0
  %1777 = vmatprep.subr.mxu0 0.0
  %1778 = vmatpush1.msra.mxu0 0.0
  %1779 = vmatprep.subr.mxu0 0.0
  %1780 = vmatpush1.msra.mxu0 0.0
  %1781 = vmatprep.subr.mxu0 0.0
  %1782 = vmatpush1.msra.mxu0 0.0
  %1783 = vmatprep.subr.mxu0 0.0
  %1784 = vmatpush1.msra.mxu0 0.0
  %1785 = vmatprep.subr.mxu0 0.0
  %1786 = vmatpush1.msra.mxu0 0.0
  %1787 = vmatprep.subr.mxu0 0.0
  %1788 = vmatpush1.msra.mxu0 0.0
  %1789 = vmatprep.subr.mxu0 0.0
  %1790 = vmatpush1.msra.mxu0 0.0
  %1791 = vmatprep.subr.mxu0 0.0
  %1792 = vmatpush1.msra.mxu0 0.0
  %1793 = vmatprep.subr.mxu0 0.0
  %1794 = vmatpush1.msra.mxu0 0.0
  %1795 = vmatprep.subr.mxu0 0.0
  %1796 = vmatpush1.msra.mxu0 0.0
  %1797 = vmatprep.subr.mxu0 0.0
  %1798 = vmatpush1.msra.mxu0 0.0
  %1799 = vmatprep.subr.mxu0 0.0
  %1800 = vmatpush1.msra.mxu0 0.0
  %1801 = vmatprep.subr.mxu0 0.0
  %1802 = vmatpush1.msra.mxu0 0.0
  %1803 = vmatprep.subr.mxu0 0.0
  %1804 = vmatpush1.msra.mxu0 0.0
  %1805 = vmatprep.subr.mxu0 0.0
  %1806 = vmatpush1.msra.mxu0 0.0
  %1807 = vmatprep.subr.mxu0 0.0
  %1808 = vmatpush1.msra.mxu0 0.0
  %1809 = vmatprep.subr.mxu0 0.0
  %1810 = vmatpush1.msra.mxu0 0.0
  %1811 = vmatprep.subr.mxu0 0.0
  %1812 = vmatpush1.msra.mxu0 0.0
  %1813 = vmatprep.subr.mxu0 0.0
  %1814 = vmatpush1.msra.mxu0 0.0
  %1815 = vmatprep.mubr.f32.mxu0 0.0
  %v1816 = vand.u32 %v1744, 4294901760
  %v1817 = vsub.f32 %v1744, %v1816
  %v1818 = vand.u32 %v1817, 4294901760
  %v1819 = vsub.f32 %v1817, %v1818
  %v1820 = vand.u32 %v1819, 4294901760
  %1821 = vmatmul.mubr.f32.gmra.mrb[0].mxu0 %v1820
  %v1822 = vpop.f32.mrb[0].mxu0
  %v1823 = vadd.f32 %v1740, %v1822
  %v1824 = vpop.f32.mrb[0].mxu0
  %1825 = vmatprep.mubr.f32.mxu0 0.0
  %v1826 = vand.u32 %v1747, 4294901760
  %v1827 = vsub.f32 %v1747, %v1826
  %v1828 = vand.u32 %v1827, 4294901760
  %v1829 = vsub.f32 %v1827, %v1828
  %v1830 = vand.u32 %v1829, 4294901760
  %1831 = vmatmul.mubr.f32.gmra.mrb[0].mxu0 %v1830
  %v1832 = vpop.f32.mrb[0].mxu0
  %v1833 = vadd.f32 %v1740, %v1832
  %v1834 = vpop.f32.mrb[0].mxu0
  %1835 = vdwg.mxu0
  %1836 = vmatprep.subr.mxu0 0.0
  %v1837 = vand.u32 %v1733, 4294901760
  %v1838 = vsub.f32 %v1733, %v1837
  %v1839 = vand.u32 %v1838, 4294901760
  %v1840 = vsub.f32 %v1838, %v1839
  %v1841 = vand.u32 %v1840, 4294901760
  %1842 = vmatpush1.msra.mxu0 %v1841
  %1843 = vmatprep.subr.mxu0 0.0
  %v1844 = vand.u32 %v1734, 4294901760
  %v1845 = vsub.f32 %v1734, %v1844
  %v1846 = vand.u32 %v1845, 4294901760
  %v1847 = vsub.f32 %v1845, %v1846
  %v1848 = vand.u32 %v1847, 4294901760
  %1849 = vmatpush1.msra.mxu0 %v1848
  %1850 = vmatprep.subr.mxu0 0.0
  %1851 = vmatpush1.msra.mxu0 0.0
  %1852 = vmatprep.subr.mxu0 0.0
  %1853 = vmatpush1.msra.mxu0 0.0
  %1854 = vmatprep.subr.mxu0 0.0
  %1855 = vmatpush1.msra.mxu0 0.0
  %1856 = vmatprep.subr.mxu0 0.0
  %1857 = vmatpush1.msra.mxu0 0.0
  %1858 = vmatprep.subr.mxu0 0.0
  %1859 = vmatpush1.msra.mxu0 0.0
  %1860 = vmatprep.subr.mxu0 0.0
  %1861 = vmatpush1.msra.mxu0 0.0
  %1862 = vmatprep.subr.mxu0 0.0
  %1863 = vmatpush1.msra.mxu0 0.0
  %1864 = vmatprep.subr.mxu0 0.0
  %1865 = vmatpush1.msra.mxu0 0.0
  %1866 = vmatprep.subr.mxu0 0.0
  %1867 = vmatpush1.msra.mxu0 0.0
  %1868 = vmatprep.subr.mxu0 0.0
  %1869 = vmatpush1.msra.mxu0 0.0
  %1870 = vmatprep.subr.mxu0 0.0
  %1871 = vmatpush1.msra.mxu0 0.0
  %1872 = vmatprep.subr.mxu0 0.0
  %1873 = vmatpush1.msra.mxu0 0.0
  %1874 = vmatprep.subr.mxu0 0.0
  %1875 = vmatpush1.msra.mxu0 0.0
  %1876 = vmatprep.subr.mxu0 0.0
  %1877 = vmatpush1.msra.mxu0 0.0
  %1878 = vmatprep.subr.mxu0 0.0
  %1879 = vmatpush1.msra.mxu0 0.0
  %1880 = vmatprep.subr.mxu0 0.0
  %1881 = vmatpush1.msra.mxu0 0.0
  %1882 = vmatprep.subr.mxu0 0.0
  %1883 = vmatpush1.msra.mxu0 0.0
  %1884 = vmatprep.subr.mxu0 0.0
  %1885 = vmatpush1.msra.mxu0 0.0
  %1886 = vmatprep.subr.mxu0 0.0
  %1887 = vmatpush1.msra.mxu0 0.0
  %1888 = vmatprep.subr.mxu0 0.0
  %1889 = vmatpush1.msra.mxu0 0.0
  %1890 = vmatprep.subr.mxu0 0.0
  %1891 = vmatpush1.msra.mxu0 0.0
  %1892 = vmatprep.subr.mxu0 0.0
  %1893 = vmatpush1.msra.mxu0 0.0
  %1894 = vmatprep.subr.mxu0 0.0
  %1895 = vmatpush1.msra.mxu0 0.0
  %1896 = vmatprep.subr.mxu0 0.0
  %1897 = vmatpush1.msra.mxu0 0.0
  %1898 = vmatprep.subr.mxu0 0.0
  %1899 = vmatpush1.msra.mxu0 0.0
  %1900 = vmatprep.subr.mxu0 0.0
  %1901 = vmatpush1.msra.mxu0 0.0
  %1902 = vmatprep.subr.mxu0 0.0
  %1903 = vmatpush1.msra.mxu0 0.0
  %1904 = vmatprep.subr.mxu0 0.0
  %1905 = vmatpush1.msra.mxu0 0.0
  %1906 = vmatprep.subr.mxu0 0.0
  %1907 = vmatpush1.msra.mxu0 0.0
  %1908 = vmatprep.subr.mxu0 0.0
  %1909 = vmatpush1.msra.mxu0 0.0
  %1910 = vmatprep.mubr.f32.mxu0 0.0
  %v1911 = vand.u32 %v1744, 4294901760
  %1912 = vmatmul.mubr.f32.gmra.mrb[0].mxu0 %v1911
  %v1913 = vpop.f32.mrb[0].mxu0
  %v1914 = vadd.f32 %v1823, %v1913
  %v1915 = vpop.f32.mrb[0].mxu0
  %1916 = vmatprep.mubr.f32.mxu0 0.0
  %v1917 = vand.u32 %v1747, 4294901760
  %1918 = vmatmul.mubr.f32.gmra.mrb[0].mxu0 %v1917
  %v1919 = vpop.f32.mrb[0].mxu0
  %v1920 = vadd.f32 %v1833, %v1919
  %v1921 = vpop.f32.mrb[0].mxu0
  %1922 = vdwg.mxu0
  %1923 = vmatprep.subr.mxu0 0.0
  %v1924 = vand.u32 %v1733, 4294901760
  %v1925 = vsub.f32 %v1733, %v1924
  %1926 = vmatpush1.msra.mxu0 %v1925
  %1927 = vmatprep.subr.mxu0 0.0
  %v1928 = vand.u32 %v1734, 4294901760
  %v1929 = vsub.f32 %v1734, %v1928
  %1930 = vmatpush1.msra.mxu0 %v1929
  %1931 = vmatprep.subr.mxu0 0.0
  %1932 = vmatpush1.msra.mxu0 0.0
  %1933 = vmatprep.subr.mxu0 0.0
  %1934 = vmatpush1.msra.mxu0 0.0
  %1935 = vmatprep.subr.mxu0 0.0
  %1936 = vmatpush1.msra.mxu0 0.0
  %1937 = vmatprep.subr.mxu0 0.0
  %1938 = vmatpush1.msra.mxu0 0.0
  %1939 = vmatprep.subr.mxu0 0.0
  %1940 = vmatpush1.msra.mxu0 0.0
  %1941 = vmatprep.subr.mxu0 0.0
  %1942 = vmatpush1.msra.mxu0 0.0
  %1943 = vmatprep.subr.mxu0 0.0
  %1944 = vmatpush1.msra.mxu0 0.0
  %1945 = vmatprep.subr.mxu0 0.0
  %1946 = vmatpush1.msra.mxu0 0.0
  %1947 = vmatprep.subr.mxu0 0.0
  %1948 = vmatpush1.msra.mxu0 0.0
  %1949 = vmatprep.subr.mxu0 0.0
  %1950 = vmatpush1.msra.mxu0 0.0
  %1951 = vmatprep.subr.mxu0 0.0
  %1952 = vmatpush1.msra.mxu0 0.0
  %1953 = vmatprep.subr.mxu0 0.0
  %1954 = vmatpush1.msra.mxu0 0.0
  %1955 = vmatprep.subr.mxu0 0.0
  %1956 = vmatpush1.msra.mxu0 0.0
  %1957 = vmatprep.subr.mxu0 0.0
  %1958 = vmatpush1.msra.mxu0 0.0
  %1959 = vmatprep.subr.mxu0 0.0
  %1960 = vmatpush1.msra.mxu0 0.0
  %1961 = vmatprep.subr.mxu0 0.0
  %1962 = vmatpush1.msra.mxu0 0.0
  %1963 = vmatprep.subr.mxu0 0.0
  %1964 = vmatpush1.msra.mxu0 0.0
  %1965 = vmatprep.subr.mxu0 0.0
  %1966 = vmatpush1.msra.mxu0 0.0
  %1967 = vmatprep.subr.mxu0 0.0
  %1968 = vmatpush1.msra.mxu0 0.0
  %1969 = vmatprep.subr.mxu0 0.0
  %1970 = vmatpush1.msra.mxu0 0.0
  %1971 = vmatprep.subr.mxu0 0.0
  %1972 = vmatpush1.msra.mxu0 0.0
  %1973 = vmatprep.subr.mxu0 0.0
  %1974 = vmatpush1.msra.mxu0 0.0
  %1975 = vmatprep.subr.mxu0 0.0
  %1976 = vmatpush1.msra.mxu0 0.0
  %1977 = vmatprep.subr.mxu0 0.0
  %1978 = vmatpush1.msra.mxu0 0.0
  %1979 = vmatprep.subr.mxu0 0.0
  %1980 = vmatpush1.msra.mxu0 0.0
  %1981 = vmatprep.subr.mxu0 0.0
  %1982 = vmatpush1.msra.mxu0 0.0
  %1983 = vmatprep.subr.mxu0 0.0
  %1984 = vmatpush1.msra.mxu0 0.0
  %1985 = vmatprep.subr.mxu0 0.0
  %1986 = vmatpush1.msra.mxu0 0.0
  %1987 = vmatprep.subr.mxu0 0.0
  %1988 = vmatpush1.msra.mxu0 0.0
  %1989 = vmatprep.subr.mxu0 0.0
  %1990 = vmatpush1.msra.mxu0 0.0
  %1991 = vmatprep.mubr.f32.mxu0 0.0
  %v1992 = vand.u32 %v1744, 4294901760
  %v1993 = vsub.f32 %v1744, %v1992
  %1994 = vmatmul.mubr.f32.gmra.mrb[0].mxu0 %v1993
  %v1995 = vpop.f32.mrb[0].mxu0
  %v1996 = vadd.f32 %v1914, %v1995
  %v1997 = vpop.f32.mrb[0].mxu0
  %1998 = vmatprep.mubr.f32.mxu0 0.0
  %v1999 = vand.u32 %v1747, 4294901760
  %v2000 = vsub.f32 %v1747, %v1999
  %2001 = vmatmul.mubr.f32.gmra.mrb[0].mxu0 %v2000
  %v2002 = vpop.f32.mrb[0].mxu0
  %v2003 = vadd.f32 %v1920, %v2002
  %v2004 = vpop.f32.mrb[0].mxu0
  %2005 = vdwg.mxu0
  %2006 = vmatprep.subr.mxu0 0.0
  %v2007 = vand.u32 %v1733, 4294901760
  %2008 = vmatpush1.msra.mxu0 %v2007
  %2009 = vmatprep.subr.mxu0 0.0
  %v2010 = vand.u32 %v1734, 4294901760
  %2011 = vmatpush1.msra.mxu0 %v2010
  %2012 = vmatprep.subr.mxu0 0.0
  %2013 = vmatpush1.msra.mxu0 0.0
  %2014 = vmatprep.subr.mxu0 0.0
  %2015 = vmatpush1.msra.mxu0 0.0
  %2016 = vmatprep.subr.mxu0 0.0
  %2017 = vmatpush1.msra.mxu0 0.0
  %2018 = vmatprep.subr.mxu0 0.0
  %2019 = vmatpush1.msra.mxu0 0.0
  %2020 = vmatprep.subr.mxu0 0.0
  %2021 = vmatpush1.msra.mxu0 0.0
  %2022 = vmatprep.subr.mxu0 0.0
  %2023 = vmatpush1.msra.mxu0 0.0
  %2024 = vmatprep.subr.mxu0 0.0
  %2025 = vmatpush1.msra.mxu0 0.0
  %2026 = vmatprep.subr.mxu0 0.0
  %2027 = vmatpush1.msra.mxu0 0.0
  %2028 = vmatprep.subr.mxu0 0.0
  %2029 = vmatpush1.msra.mxu0 0.0
  %2030 = vmatprep.subr.mxu0 0.0
  %2031 = vmatpush1.msra.mxu0 0.0
  %2032 = vmatprep.subr.mxu0 0.0
  %2033 = vmatpush1.msra.mxu0 0.0
  %2034 = vmatprep.subr.mxu0 0.0
  %2035 = vmatpush1.msra.mxu0 0.0
  %2036 = vmatprep.subr.mxu0 0.0
  %2037 = vmatpush1.msra.mxu0 0.0
  %2038 = vmatprep.subr.mxu0 0.0
  %2039 = vmatpush1.msra.mxu0 0.0
  %2040 = vmatprep.subr.mxu0 0.0
  %2041 = vmatpush1.msra.mxu0 0.0
  %2042 = vmatprep.subr.mxu0 0.0
  %2043 = vmatpush1.msra.mxu0 0.0
  %2044 = vmatprep.subr.mxu0 0.0
  %2045 = vmatpush1.msra.mxu0 0.0
  %2046 = vmatprep.subr.mxu0 0.0
  %2047 = vmatpush1.msra.mxu0 0.0
  %2048 = vmatprep.subr.mxu0 0.0
  %2049 = vmatpush1.msra.mxu0 0.0
  %2050 = vmatprep.subr.mxu0 0.0
  %2051 = vmatpush1.msra.mxu0 0.0
  %2052 = vmatprep.subr.mxu0 0.0
  %2053 = vmatpush1.msra.mxu0 0.0
  %2054 = vmatprep.subr.mxu0 0.0
  %2055 = vmatpush1.msra.mxu0 0.0
  %2056 = vmatprep.subr.mxu0 0.0
  %2057 = vmatpush1.msra.mxu0 0.0
  %2058 = vmatprep.subr.mxu0 0.0
  %2059 = vmatpush1.msra.mxu0 0.0
  %2060 = vmatprep.subr.mxu0 0.0
  %2061 = vmatpush1.msra.mxu0 0.0
  %2062 = vmatprep.subr.mxu0 0.0
  %2063 = vmatpush1.msra.mxu0 0.0
  %2064 = vmatprep.subr.mxu0 0.0
  %2065 = vmatpush1.msra.mxu0 0.0
  %2066 = vmatprep.subr.mxu0 0.0
  %2067 = vmatpush1.msra.mxu0 0.0
  %2068 = vmatprep.subr.mxu0 0.0
  %2069 = vmatpush1.msra.mxu0 0.0
  %2070 = vmatprep.subr.mxu0 0.0
  %2071 = vmatpush1.msra.mxu0 0.0
  %2072 = vmatprep.mubr.f32.mxu0 0.0
  %v2073 = vand.u32 %v1744, 4294901760
  %v2074 = vsub.f32 %v1744, %v2073
  %v2075 = vand.u32 %v2074, 4294901760
  %2076 = vmatmul.mubr.f32.gmra.mrb[0].mxu0 %v2075
  %v2077 = vpop.f32.mrb[0].mxu0
  %v2078 = vadd.f32 %v1996, %v2077
  %v2079 = vpop.f32.mrb[0].mxu0
  %2080 = vmatprep.mubr.f32.mxu0 0.0
  %v2081 = vand.u32 %v1747, 4294901760
  %v2082 = vsub.f32 %v1747, %v2081
  %v2083 = vand.u32 %v2082, 4294901760
  %2084 = vmatmul.mubr.f32.gmra.mrb[0].mxu0 %v2083
  %v2085 = vpop.f32.mrb[0].mxu0
  %v2086 = vadd.f32 %v2003, %v2085
  %v2087 = vpop.f32.mrb[0].mxu0
  %2088 = vdwg.mxu0
  %2089 = vmatprep.subr.mxu0 0.0
  %v2090 = vand.u32 %v1733, 4294901760
  %v2091 = vsub.f32 %v1733, %v2090
  %v2092 = vand.u32 %v2091, 4294901760
  %2093 = vmatpush1.msra.mxu0 %v2092
  %2094 = vmatprep.subr.mxu0 0.0
  %v2095 = vand.u32 %v1734, 4294901760
  %v2096 = vsub.f32 %v1734, %v2095
  %v2097 = vand.u32 %v2096, 4294901760
  %2098 = vmatpush1.msra.mxu0 %v2097
  %2099 = vmatprep.subr.mxu0 0.0
  %2100 = vmatpush1.msra.mxu0 0.0
  %2101 = vmatprep.subr.mxu0 0.0
  %2102 = vmatpush1.msra.mxu0 0.0
  %2103 = vmatprep.subr.mxu0 0.0
  %2104 = vmatpush1.msra.mxu0 0.0
  %2105 = vmatprep.subr.mxu0 0.0
  %2106 = vmatpush1.msra.mxu0 0.0
  %2107 = vmatprep.subr.mxu0 0.0
  %2108 = vmatpush1.msra.mxu0 0.0
  %2109 = vmatprep.subr.mxu0 0.0
  %2110 = vmatpush1.msra.mxu0 0.0
  %2111 = vmatprep.subr.mxu0 0.0
  %2112 = vmatpush1.msra.mxu0 0.0
  %2113 = vmatprep.subr.mxu0 0.0
  %2114 = vmatpush1.msra.mxu0 0.0
  %2115 = vmatprep.subr.mxu0 0.0
  %2116 = vmatpush1.msra.mxu0 0.0
  %2117 = vmatprep.subr.mxu0 0.0
  %2118 = vmatpush1.msra.mxu0 0.0
  %2119 = vmatprep.subr.mxu0 0.0
  %2120 = vmatpush1.msra.mxu0 0.0
  %2121 = vmatprep.subr.mxu0 0.0
  %2122 = vmatpush1.msra.mxu0 0.0
  %2123 = vmatprep.subr.mxu0 0.0
  %2124 = vmatpush1.msra.mxu0 0.0
  %2125 = vmatprep.subr.mxu0 0.0
  %2126 = vmatpush1.msra.mxu0 0.0
  %2127 = vmatprep.subr.mxu0 0.0
  %2128 = vmatpush1.msra.mxu0 0.0
  %2129 = vmatprep.subr.mxu0 0.0
  %2130 = vmatpush1.msra.mxu0 0.0
  %2131 = vmatprep.subr.mxu0 0.0
  %2132 = vmatpush1.msra.mxu0 0.0
  %2133 = vmatprep.subr.mxu0 0.0
  %2134 = vmatpush1.msra.mxu0 0.0
  %2135 = vmatprep.subr.mxu0 0.0
  %2136 = vmatpush1.msra.mxu0 0.0
  %2137 = vmatprep.subr.mxu0 0.0
  %2138 = vmatpush1.msra.mxu0 0.0
  %2139 = vmatprep.subr.mxu0 0.0
  %2140 = vmatpush1.msra.mxu0 0.0
  %2141 = vmatprep.subr.mxu0 0.0
  %2142 = vmatpush1.msra.mxu0 0.0
  %2143 = vmatprep.subr.mxu0 0.0
  %2144 = vmatpush1.msra.mxu0 0.0
  %2145 = vmatprep.subr.mxu0 0.0
  %2146 = vmatpush1.msra.mxu0 0.0
  %2147 = vmatprep.subr.mxu0 0.0
  %2148 = vmatpush1.msra.mxu0 0.0
  %2149 = vmatprep.subr.mxu0 0.0
  %2150 = vmatpush1.msra.mxu0 0.0
  %2151 = vmatprep.subr.mxu0 0.0
  %2152 = vmatpush1.msra.mxu0 0.0
  %2153 = vmatprep.subr.mxu0 0.0
  %2154 = vmatpush1.msra.mxu0 0.0
  %2155 = vmatprep.subr.mxu0 0.0
  %2156 = vmatpush1.msra.mxu0 0.0
  %2157 = vmatprep.subr.mxu0 0.0
  %2158 = vmatpush1.msra.mxu0 0.0
  %2159 = vmatprep.mubr.f32.mxu0 0.0
  %v2160 = vand.u32 %v1744, 4294901760
  %2161 = vmatmul.mubr.f32.gmra.mrb[0].mxu0 %v2160
  %v2162 = vpop.f32.mrb[0].mxu0
  %v2163 = vadd.f32 %v2078, %v2162
  %v2164 = vpop.f32.mrb[0].mxu0
  %2165 = vmatprep.mubr.f32.mxu0 0.0
  %v2166 = vand.u32 %v1747, 4294901760
  %2167 = vmatmul.mubr.f32.gmra.mrb[0].mxu0 %v2166
  %v2168 = vpop.f32.mrb[0].mxu0
  %v2169 = vadd.f32 %v2086, %v2168
  %v2170 = vpop.f32.mrb[0].mxu0
  %2171 = vdwg.mxu0
  %2172 = vmatprep.subr.mxu0 0.0
  %v2173 = vand.u32 %v1733, 4294901760
  %2174 = vmatpush1.msra.mxu0 %v2173
  %2175 = vmatprep.subr.mxu0 0.0
  %v2176 = vand.u32 %v1734, 4294901760
  %2177 = vmatpush1.msra.mxu0 %v2176
  %2178 = vmatprep.subr.mxu0 0.0
  %2179 = vmatpush1.msra.mxu0 0.0
  %2180 = vmatprep.subr.mxu0 0.0
  %2181 = vmatpush1.msra.mxu0 0.0
  %2182 = vmatprep.subr.mxu0 0.0
  %2183 = vmatpush1.msra.mxu0 0.0
  %2184 = vmatprep.subr.mxu0 0.0
  %2185 = vmatpush1.msra.mxu0 0.0
  %2186 = vmatprep.subr.mxu0 0.0
  %2187 = vmatpush1.msra.mxu0 0.0
  %2188 = vmatprep.subr.mxu0 0.0
  %2189 = vmatpush1.msra.mxu0 0.0
  %2190 = vmatprep.subr.mxu0 0.0
  %2191 = vmatpush1.msra.mxu0 0.0
  %2192 = vmatprep.subr.mxu0 0.0
  %2193 = vmatpush1.msra.mxu0 0.0
  %2194 = vmatprep.subr.mxu0 0.0
  %2195 = vmatpush1.msra.mxu0 0.0
  %2196 = vmatprep.subr.mxu0 0.0
  %2197 = vmatpush1.msra.mxu0 0.0
  %2198 = vmatprep.subr.mxu0 0.0
  %2199 = vmatpush1.msra.mxu0 0.0
  %2200 = vmatprep.subr.mxu0 0.0
  %2201 = vmatpush1.msra.mxu0 0.0
  %2202 = vmatprep.subr.mxu0 0.0
  %2203 = vmatpush1.msra.mxu0 0.0
  %2204 = vmatprep.subr.mxu0 0.0
  %2205 = vmatpush1.msra.mxu0 0.0
  %2206 = vmatprep.subr.mxu0 0.0
  %2207 = vmatpush1.msra.mxu0 0.0
  %2208 = vmatprep.subr.mxu0 0.0
  %2209 = vmatpush1.msra.mxu0 0.0
  %2210 = vmatprep.subr.mxu0 0.0
  %2211 = vmatpush1.msra.mxu0 0.0
  %2212 = vmatprep.subr.mxu0 0.0
  %2213 = vmatpush1.msra.mxu0 0.0
  %2214 = vmatprep.subr.mxu0 0.0
  %2215 = vmatpush1.msra.mxu0 0.0
  %2216 = vmatprep.subr.mxu0 0.0
  %2217 = vmatpush1.msra.mxu0 0.0
  %2218 = vmatprep.subr.mxu0 0.0
  %2219 = vmatpush1.msra.mxu0 0.0
  %2220 = vmatprep.subr.mxu0 0.0
  %2221 = vmatpush1.msra.mxu0 0.0
  %2222 = vmatprep.subr.mxu0 0.0
  %2223 = vmatpush1.msra.mxu0 0.0
  %2224 = vmatprep.subr.mxu0 0.0
  %2225 = vmatpush1.msra.mxu0 0.0
  %2226 = vmatprep.subr.mxu0 0.0
  %2227 = vmatpush1.msra.mxu0 0.0
  %2228 = vmatprep.subr.mxu0 0.0
  %2229 = vmatpush1.msra.mxu0 0.0
  %2230 = vmatprep.subr.mxu0 0.0
  %2231 = vmatpush1.msra.mxu0 0.0
  %2232 = vmatprep.subr.mxu0 0.0
  %2233 = vmatpush1.msra.mxu0 0.0
  %2234 = vmatprep.subr.mxu0 0.0
  %2235 = vmatpush1.msra.mxu0 0.0
  %2236 = vmatprep.subr.mxu0 0.0
  %2237 = vmatpush1.msra.mxu0 0.0
  %2238 = vmatprep.mubr.f32.mxu0 0.0
  %v2239 = vand.u32 %v1744, 4294901760
  %2240 = vmatmul.mubr.f32.gmra.mrb[0].mxu0 %v2239
  %v2241 = vpop.f32.mrb[0].mxu0
  %v2242 = vadd.f32 %v2163, %v2241
  %v2243 = vpop.f32.mrb[0].mxu0
  %2244 = vmatprep.mubr.f32.mxu0 0.0
  %v2245 = vand.u32 %v1747, 4294901760
  %2246 = vmatmul.mubr.f32.gmra.mrb[0].mxu0 %v2245
  %v2247 = vpop.f32.mrb[0].mxu0
  %v2248 = vadd.f32 %v2169, %v2247
  %v2249 = vpop.f32.mrb[0].mxu0
  %2250 = vdwg.mxu0
  %vm2251 = vcmask 64512
  %2252 = vst.msk [vmem:[%s9] sm:$0xff] %vm2251, %v2242
  %2253 = vst.msk [vmem:[%s9 + $0x8] sm:$0xff] %vm2251, %v2248
  // Predicated region
  $region38: #{tpu_custom_call.1} parent=0 // pred_check
    _
  $region39: #{tpu_custom_call.1} parent=0 // pred_check_branch
    %2255 = sbr.rel (0) target = $region41
  $region40: #{tpu_custom_call.1} parent=0 // pred_region
    _
  $region41: #{tpu_custom_call.1} parent=0 // pred_fallthru
    _
  // Predicated region
  $region42: #{tpu_custom_call.1} parent=0 // pred_check
    _
  $region43: #{tpu_custom_call.1} parent=0 // pred_check_branch
    %2257 = sbr.rel (0) target = $region45
  $region44: #{tpu_custom_call.1} parent=0 // pred_region
    _
  $region45: #{tpu_custom_call.1} parent=0 // pred_fallthru
    _

</llo_original>
